<compile_context>
chip_gen: v7x
topology: tpu7x:2x2x1
jax: 0.10.0
libtpu: 0.0.40
codegen_flags: <defaults>
</compile_context>

<pallas_src>
import functools
import math

import jax
import jax.numpy as jnp
from jax import lax
from jax.experimental import pallas as pl
from jax.experimental.pallas import tpu as pltpu


def _attention_kernel(q_ref, k_ref, mask_ref, v_ref, o_ref, *, flat_out):
    # Per-(batch, Sq-tile) VMEM tiles:
    #   q_ref    : (1, H, tq, D)
    #   k_ref    : (1, H, Sk, D)
    #   mask_ref : (1, H, tq, Sk)
    #   v_ref    : (1, H, Sk, D)
    #   o_ref    : (1, H, tq*D)  if flat_out else (1, H, tq, D)
    q = q_ref[0]                                # (H, tq, D), native dtype
    k = k_ref[0]                                # (H, Sk, D)
    v = v_ref[0]                                # (H, Sk, D)
    m = mask_ref[0].astype(jnp.float32)         # (H, tq, Sk), upcast at use

    H, tq, D = q.shape
    scale = 1.0 / math.sqrt(D)

    # QK^T: bf16 MXU operands, f32 accumulation.  Contraction on D, batch
    # over H -- no explicit k transpose materialized.
    s = lax.dot_general(
        q.astype(jnp.bfloat16), k.astype(jnp.bfloat16),
        dimension_numbers=(((2,), (2,)), ((0,), (0,))),
        preferred_element_type=jnp.float32,
    )                                           # (H, tq, Sk), f32
    # Apply the scale on the f32 scores (avoids bf16-quantizing the scale),
    # then the additive mask.
    s = s * scale + m

    # Numerically-stable softmax over Sk (f32 math on VPU/EUP).
    s_max = jnp.max(s, axis=-1, keepdims=True)
    p = jnp.exp(s - s_max)
    denom = jnp.sum(p, axis=-1, keepdims=True)  # (H, tq, 1)

    # PV: bf16 operands, f32 accumulation; normalize the (tq, D) output
    # instead of the (tq, Sk) probability matrix.
    out = lax.dot_general(
        p.astype(jnp.bfloat16), v.astype(jnp.bfloat16),
        dimension_numbers=(((2,), (1,)), ((0,), (0,))),
        preferred_element_type=jnp.float32,
    )                                           # (H, tq, D), f32
    out = out * pl.reciprocal(denom, approx=False)

    if flat_out:
        # Lane-dense store: (H, tq, D) -> (H, tq*D) so the vst is unmasked
        # when tq*D is a multiple of 128 (XLU relayout, not a transpose).
        o_ref[0] = out.reshape(H, tq * D).astype(o_ref.dtype)
    else:
        o_ref[0] = out.astype(o_ref.dtype)


def _pick_sq_tile(Sq):
    for cand in (512, 256, 128):
        if Sq >= cand and Sq % cand == 0:
            return cand
    return Sq


def _make_sdpa_call(B, H, Sq, Sk, D, q_dtype, mask_dtype, *, flat_out):
    tq = _pick_sq_tile(Sq)
    n_sq = Sq // tq

    itemsize = jnp.dtype(q_dtype).itemsize
    m_itemsize = jnp.dtype(mask_dtype).itemsize
    block_bytes = (
        H * tq * D * itemsize            # q tile
        + 2 * H * Sk * D * itemsize      # k, v tiles
        + H * tq * Sk * m_itemsize       # mask tile
        + H * tq * D * itemsize          # out tile
    )
    # Double-buffered blocks + f32 score/prob intermediates + headroom,
    # clamped to v7x's 64 MiB physical VMEM.
    vmem_limit = int(min(max(4 * block_bytes + (8 << 20), 32 << 20), 64 << 20))

    if flat_out:
        out_shape = jax.ShapeDtypeStruct((B, H, Sq * D), q_dtype)
        out_spec = pl.BlockSpec((1, H, tq * D), lambda b, s: (b, 0, s))
    else:
        out_shape = jax.ShapeDtypeStruct((B, H, Sq, D), q_dtype)
        out_spec = pl.BlockSpec((1, H, tq, D), lambda b, s: (b, 0, s, 0))

    return pl.pallas_call(
        functools.partial(_attention_kernel, flat_out=flat_out),
        out_shape=out_shape,
        grid_spec=pltpu.PrefetchScalarGridSpec(
            num_scalar_prefetch=0,
            grid=(B, n_sq),
            in_specs=[
                pl.BlockSpec((1, H, tq, D), lambda b, s: (b, 0, s, 0)),
                pl.BlockSpec((1, H, Sk, D), lambda b, s: (b, 0, 0, 0)),
                pl.BlockSpec((1, H, tq, Sk), lambda b, s: (b, 0, s, 0)),
                pl.BlockSpec((1, H, Sk, D), lambda b, s: (b, 0, 0, 0)),
            ],
            out_specs=out_spec,
        ),
        compiler_params=pltpu.CompilerParams(
            dimension_semantics=("parallel", "parallel"),
            vmem_limit_bytes=vmem_limit,
        ),
    )


def sdpa_pallas(q, k, mask, v):
    B, H, Sq, D = q.shape
    Sk = k.shape[2]
    assert k.shape == (B, H, Sk, D)
    assert v.shape == (B, H, Sk, D)
    assert mask.shape == (B, H, Sq, Sk)

    # Lane-dense flattened output only pays off when D itself is not already
    # a multiple of 128.
    want_flat = (D % 128) != 0
    if want_flat:
        try:
            fn = _make_sdpa_call(B, H, Sq, Sk, D, q.dtype, mask.dtype,
                                 flat_out=True)
            out_flat = fn(q, k, mask, v)
            return out_flat.reshape(B, H, Sq, D)   # free row-major reshape
        except Exception:
            # Fallback if the in-kernel (H,tq,D)->(H,tq*D) relayout does not
            # lower on this toolchain; semantics are identical.
            pass
    fn = _make_sdpa_call(B, H, Sq, Sk, D, q.dtype, mask.dtype, flat_out=False)
    return fn(q, k, mask, v)


def sdpa_reference(q, k, mask, v):
    scale = 1.0 / math.sqrt(q.shape[-1])
    s = jnp.einsum("bhqd,bhkd->bhqk", q, k) * scale + mask
    attn = jax.nn.softmax(s, axis=-1)
    return jnp.einsum("bhqk,bhkd->bhqd", attn, v)


if __name__ == "__main__":
    B, H, Sq, Sk, D = 2, 4, 8, 8, 32

    key = jax.random.PRNGKey(0)
    kq, kk, km, kv = jax.random.split(key, 4)
    # bf16 storage for q/k/v/mask (per perf review): native MXU dtype,
    # half the HBM/DMA bytes.
    q = jax.random.normal(kq, (B, H, Sq, D), dtype=jnp.float32).astype(jnp.bfloat16)
    k = jax.random.normal(kk, (B, H, Sk, D), dtype=jnp.float32).astype(jnp.bfloat16)
    mask = jax.random.normal(km, (B, H, Sq, Sk), dtype=jnp.float32).astype(jnp.bfloat16)
    v = jax.random.normal(kv, (B, H, Sk, D), dtype=jnp.float32).astype(jnp.bfloat16)

    out = sdpa_pallas(q, k, mask, v)
    out = jax.block_until_ready(out)

    ref = sdpa_reference(q.astype(jnp.float32), k.astype(jnp.float32),
                         mask.astype(jnp.float32), v.astype(jnp.float32))
    assert out.shape == (B, H, Sq, D)
    assert jnp.allclose(out.astype(jnp.float32), ref, atol=5e-2, rtol=5e-2)

    print("KERNEL_OK")
</pallas_src>

<mosaic_0001>
module attributes {stable_mosaic.version = 11 : i64} {
  func.func @_attention_kernel(%arg0: i32, %arg1: i32, %arg2: memref<1x4x8x32xbf16, #tpu.memory_space<vmem>>, %arg3: memref<1x4x8x32xbf16, #tpu.memory_space<vmem>>, %arg4: memref<1x4x8x8xbf16, #tpu.memory_space<vmem>>, %arg5: memref<1x4x8x32xbf16, #tpu.memory_space<vmem>>, %arg6: memref<1x4x256xbf16, #tpu.memory_space<vmem>>) attributes {dimension_semantics = [#tpu.dimension_semantics<parallel>, #tpu.dimension_semantics<parallel>], iteration_bounds = array<i64: 2, 1>, scalar_prefetch = 0 : i64, scratch_operands = 0 : i64, tpu.core_type = #tpu.core_type<tc>, window_params = [{transform_indices = @transform_0, window_bounds = array<i64: 1, 4, 8, 32>}, {transform_indices = @transform_1, window_bounds = array<i64: 1, 4, 8, 32>}, {transform_indices = @transform_2, window_bounds = array<i64: 1, 4, 8, 8>}, {transform_indices = @transform_3, window_bounds = array<i64: 1, 4, 8, 32>}, {transform_indices = @transform_4, window_bounds = array<i64: 1, 4, 256>}]} {
    %c0 = arith.constant 0 : index
    %c0_0 = arith.constant 0 : index
    %c0_1 = arith.constant 0 : index
    %c0_2 = arith.constant 0 : index
    %0 = vector.load %arg2[%c0, %c0_0, %c0_1, %c0_2] : memref<1x4x8x32xbf16, #tpu.memory_space<vmem>>, vector<1x4x8x32xbf16>
    %1 = vector.shape_cast %0 : vector<1x4x8x32xbf16> to vector<4x8x32xbf16>
    %c0_3 = arith.constant 0 : index
    %c0_4 = arith.constant 0 : index
    %c0_5 = arith.constant 0 : index
    %c0_6 = arith.constant 0 : index
    %2 = vector.load %arg3[%c0_3, %c0_4, %c0_5, %c0_6] : memref<1x4x8x32xbf16, #tpu.memory_space<vmem>>, vector<1x4x8x32xbf16>
    %3 = vector.shape_cast %2 : vector<1x4x8x32xbf16> to vector<4x8x32xbf16>
    %c0_7 = arith.constant 0 : index
    %c0_8 = arith.constant 0 : index
    %c0_9 = arith.constant 0 : index
    %c0_10 = arith.constant 0 : index
    %4 = vector.load %arg5[%c0_7, %c0_8, %c0_9, %c0_10] : memref<1x4x8x32xbf16, #tpu.memory_space<vmem>>, vector<1x4x8x32xbf16>
    %5 = vector.shape_cast %4 : vector<1x4x8x32xbf16> to vector<4x8x32xbf16>
    %c0_11 = arith.constant 0 : index
    %c0_12 = arith.constant 0 : index
    %c0_13 = arith.constant 0 : index
    %c0_14 = arith.constant 0 : index
    %6 = vector.load %arg4[%c0_11, %c0_12, %c0_13, %c0_14] : memref<1x4x8x8xbf16, #tpu.memory_space<vmem>>, vector<1x4x8x8xbf16>
    %7 = vector.shape_cast %6 : vector<1x4x8x8xbf16> to vector<4x8x8xbf16>
    %8 = arith.extf %7 : vector<4x8x8xbf16> to vector<4x8x8xf32>
    %cst = arith.constant dense<0.000000e+00> : vector<4x8x8xf32>
    %9 = tpu.matmul %1, %3, %cst {dimension_numbers = #tpu.dot_dimension_numbers<[2], [2], [1], [1], [0, 0, 0, 1, 1, 1], [0], [0]>} : vector<4x8x32xbf16>, vector<4x8x32xbf16>, vector<4x8x8xf32> -> vector<4x8x8xf32>
    %cst_15 = arith.constant 0.176776692 : f32
    %10 = vector.broadcast %cst_15 : f32 to vector<4x8x8xf32>
    %11 = arith.mulf %9, %10 : vector<4x8x8xf32>
    %12 = arith.addf %11, %8 : vector<4x8x8xf32>
    %cst_16 = arith.constant dense<0xFF800000> : vector<4x8xf32>
    %13 = vector.multi_reduction <maximumf>, %12, %cst_16 [2] : vector<4x8x8xf32> to vector<4x8xf32>
    %14 = vector.shape_cast %13 : vector<4x8xf32> to vector<4x8x1xf32>
    %15 = vector.broadcast %14 : vector<4x8x1xf32> to vector<4x8x8xf32>
    %16 = arith.subf %12, %15 : vector<4x8x8xf32>
    %17 = math.exp %16 : vector<4x8x8xf32>
    %cst_17 = arith.constant dense<0.000000e+00> : vector<4x8xf32>
    %18 = vector.multi_reduction <add>, %17, %cst_17 [2] : vector<4x8x8xf32> to vector<4x8xf32>
    %19 = vector.shape_cast %18 : vector<4x8xf32> to vector<4x8x1xf32>
    %20 = arith.truncf %17 : vector<4x8x8xf32> to vector<4x8x8xbf16>
    %cst_18 = arith.constant dense<0.000000e+00> : vector<4x8x32xf32>
    %21 = tpu.matmul %20, %5, %cst_18 {dimension_numbers = #tpu.dot_dimension_numbers<[2], [1], [1], [2], [0, 0, 0, 1, 1, 2], [0], [0]>} : vector<4x8x8xbf16>, vector<4x8x32xbf16>, vector<4x8x32xf32> -> vector<4x8x32xf32>
    %22 = tpu.reciprocal %19 : vector<4x8x1xf32> -> vector<4x8x1xf32>
    %23 = vector.broadcast %22 : vector<4x8x1xf32> to vector<4x8x32xf32>
    %24 = arith.mulf %21, %23 : vector<4x8x32xf32>
    %25 = vector.shape_cast %24 : vector<4x8x32xf32> to vector<4x256xf32>
    %26 = arith.truncf %25 : vector<4x256xf32> to vector<4x256xbf16>
    %c0_19 = arith.constant 0 : index
    %c0_20 = arith.constant 0 : index
    %c0_21 = arith.constant 0 : index
    %27 = vector.load %arg6[%c0_19, %c0_20, %c0_21] : memref<1x4x256xbf16, #tpu.memory_space<vmem>>, vector<1x4x256xbf16>
    %28 = vector.shape_cast %27 : vector<1x4x256xbf16> to vector<4x256xbf16>
    %29 = vector.shape_cast %26 : vector<4x256xbf16> to vector<1x4x256xbf16>
    tpu.vector_store %arg6[%c0_19, %c0_20, %c0_21], %29 {strides = array<i32>} : memref<1x4x256xbf16, #tpu.memory_space<vmem>>, vector<1x4x256xbf16>,
    return
  }
  func.func @transform_0(%arg0: i32, %arg1: i32) -> (i32, i32, i32, i32) {
    %c0_i32 = arith.constant 0 : i32
    %c0_i32_0 = arith.constant 0 : i32
    %c0_i32_1 = arith.constant 0 : i32
    return %arg0, %c0_i32, %arg1, %c0_i32_0 : i32, i32, i32, i32
  }
  func.func @transform_1(%arg0: i32, %arg1: i32) -> (i32, i32, i32, i32) {
    %c0_i32 = arith.constant 0 : i32
    %c0_i32_0 = arith.constant 0 : i32
    %c0_i32_1 = arith.constant 0 : i32
    %c0_i32_2 = arith.constant 0 : i32
    return %arg0, %c0_i32, %c0_i32_0, %c0_i32_1 : i32, i32, i32, i32
  }
  func.func @transform_2(%arg0: i32, %arg1: i32) -> (i32, i32, i32, i32) {
    %c0_i32 = arith.constant 0 : i32
    %c0_i32_0 = arith.constant 0 : i32
    %c0_i32_1 = arith.constant 0 : i32
    return %arg0, %c0_i32, %arg1, %c0_i32_0 : i32, i32, i32, i32
  }
  func.func @transform_3(%arg0: i32, %arg1: i32) -> (i32, i32, i32, i32) {
    %c0_i32 = arith.constant 0 : i32
    %c0_i32_0 = arith.constant 0 : i32
    %c0_i32_1 = arith.constant 0 : i32
    %c0_i32_2 = arith.constant 0 : i32
    return %arg0, %c0_i32, %c0_i32_0, %c0_i32_1 : i32, i32, i32, i32
  }
  func.func @transform_4(%arg0: i32, %arg1: i32) -> (i32, i32, i32) {
    %c0_i32 = arith.constant 0 : i32
    %c0_i32_0 = arith.constant 0 : i32
    return %arg0, %c0_i32, %arg1 : i32, i32, i32
  }
}

module attributes {stable_mosaic.version = 11 : i64} {
  func.func @_attention_kernel(%arg0: i32, %arg1: i32, %arg2: memref<1x4x8x32xbf16, #tpu.memory_space<vmem>>, %arg3: memref<1x4x8x32xbf16, #tpu.memory_space<vmem>>, %arg4: memref<1x4x8x8xbf16, #tpu.memory_space<vmem>>, %arg5: memref<1x4x8x32xbf16, #tpu.memory_space<vmem>>, %arg6: memref<1x4x8x32xbf16, #tpu.memory_space<vmem>>) attributes {dimension_semantics = [#tpu.dimension_semantics<parallel>, #tpu.dimension_semantics<parallel>], iteration_bounds = array<i64: 2, 1>, scalar_prefetch = 0 : i64, scratch_operands = 0 : i64, tpu.core_type = #tpu.core_type<tc>, window_params = [{transform_indices = @transform_0, window_bounds = array<i64: 1, 4, 8, 32>}, {transform_indices = @transform_1, window_bounds = array<i64: 1, 4, 8, 32>}, {transform_indices = @transform_2, window_bounds = array<i64: 1, 4, 8, 8>}, {transform_indices = @transform_3, window_bounds = array<i64: 1, 4, 8, 32>}, {transform_indices = @transform_4, window_bounds = array<i64: 1, 4, 8, 32>}]} {
    %c0 = arith.constant 0 : index
    %c0_0 = arith.constant 0 : index
    %c0_1 = arith.constant 0 : index
    %c0_2 = arith.constant 0 : index
    %0 = vector.load %arg2[%c0, %c0_0, %c0_1, %c0_2] : memref<1x4x8x32xbf16, #tpu.memory_space<vmem>>, vector<1x4x8x32xbf16>
    %1 = vector.shape_cast %0 : vector<1x4x8x32xbf16> to vector<4x8x32xbf16>
    %c0_3 = arith.constant 0 : index
    %c0_4 = arith.constant 0 : index
    %c0_5 = arith.constant 0 : index
    %c0_6 = arith.constant 0 : index
    %2 = vector.load %arg3[%c0_3, %c0_4, %c0_5, %c0_6] : memref<1x4x8x32xbf16, #tpu.memory_space<vmem>>, vector<1x4x8x32xbf16>
    %3 = vector.shape_cast %2 : vector<1x4x8x32xbf16> to vector<4x8x32xbf16>
    %c0_7 = arith.constant 0 : index
    %c0_8 = arith.constant 0 : index
    %c0_9 = arith.constant 0 : index
    %c0_10 = arith.constant 0 : index
    %4 = vector.load %arg5[%c0_7, %c0_8, %c0_9, %c0_10] : memref<1x4x8x32xbf16, #tpu.memory_space<vmem>>, vector<1x4x8x32xbf16>
    %5 = vector.shape_cast %4 : vector<1x4x8x32xbf16> to vector<4x8x32xbf16>
    %c0_11 = arith.constant 0 : index
    %c0_12 = arith.constant 0 : index
    %c0_13 = arith.constant 0 : index
    %c0_14 = arith.constant 0 : index
    %6 = vector.load %arg4[%c0_11, %c0_12, %c0_13, %c0_14] : memref<1x4x8x8xbf16, #tpu.memory_space<vmem>>, vector<1x4x8x8xbf16>
    %7 = vector.shape_cast %6 : vector<1x4x8x8xbf16> to vector<4x8x8xbf16>
    %8 = arith.extf %7 : vector<4x8x8xbf16> to vector<4x8x8xf32>
    %cst = arith.constant dense<0.000000e+00> : vector<4x8x8xf32>
    %9 = tpu.matmul %1, %3, %cst {dimension_numbers = #tpu.dot_dimension_numbers<[2], [2], [1], [1], [0, 0, 0, 1, 1, 1], [0], [0]>} : vector<4x8x32xbf16>, vector<4x8x32xbf16>, vector<4x8x8xf32> -> vector<4x8x8xf32>
    %cst_15 = arith.constant 0.176776692 : f32
    %10 = vector.broadcast %cst_15 : f32 to vector<4x8x8xf32>
    %11 = arith.mulf %9, %10 : vector<4x8x8xf32>
    %12 = arith.addf %11, %8 : vector<4x8x8xf32>
    %cst_16 = arith.constant dense<0xFF800000> : vector<4x8xf32>
    %13 = vector.multi_reduction <maximumf>, %12, %cst_16 [2] : vector<4x8x8xf32> to vector<4x8xf32>
    %14 = vector.shape_cast %13 : vector<4x8xf32> to vector<4x8x1xf32>
    %15 = vector.broadcast %14 : vector<4x8x1xf32> to vector<4x8x8xf32>
    %16 = arith.subf %12, %15 : vector<4x8x8xf32>
    %17 = math.exp %16 : vector<4x8x8xf32>
    %cst_17 = arith.constant dense<0.000000e+00> : vector<4x8xf32>
    %18 = vector.multi_reduction <add>, %17, %cst_17 [2] : vector<4x8x8xf32> to vector<4x8xf32>
    %19 = vector.shape_cast %18 : vector<4x8xf32> to vector<4x8x1xf32>
    %20 = arith.truncf %17 : vector<4x8x8xf32> to vector<4x8x8xbf16>
    %cst_18 = arith.constant dense<0.000000e+00> : vector<4x8x32xf32>
    %21 = tpu.matmul %20, %5, %cst_18 {dimension_numbers = #tpu.dot_dimension_numbers<[2], [1], [1], [2], [0, 0, 0, 1, 1, 2], [0], [0]>} : vector<4x8x8xbf16>, vector<4x8x32xbf16>, vector<4x8x32xf32> -> vector<4x8x32xf32>
    %22 = tpu.reciprocal %19 : vector<4x8x1xf32> -> vector<4x8x1xf32>
    %23 = vector.broadcast %22 : vector<4x8x1xf32> to vector<4x8x32xf32>
    %24 = arith.mulf %21, %23 : vector<4x8x32xf32>
    %25 = arith.truncf %24 : vector<4x8x32xf32> to vector<4x8x32xbf16>
    %c0_19 = arith.constant 0 : index
    %c0_20 = arith.constant 0 : index
    %c0_21 = arith.constant 0 : index
    %c0_22 = arith.constant 0 : index
    %26 = vector.load %arg6[%c0_19, %c0_20, %c0_21, %c0_22] : memref<1x4x8x32xbf16, #tpu.memory_space<vmem>>, vector<1x4x8x32xbf16>
    %27 = vector.shape_cast %26 : vector<1x4x8x32xbf16> to vector<4x8x32xbf16>
    %28 = vector.shape_cast %25 : vector<4x8x32xbf16> to vector<1x4x8x32xbf16>
    tpu.vector_store %arg6[%c0_19, %c0_20, %c0_21, %c0_22], %28 {strides = array<i32>} : memref<1x4x8x32xbf16, #tpu.memory_space<vmem>>, vector<1x4x8x32xbf16>,
    return
  }
  func.func @transform_0(%arg0: i32, %arg1: i32) -> (i32, i32, i32, i32) {
    %c0_i32 = arith.constant 0 : i32
    %c0_i32_0 = arith.constant 0 : i32
    %c0_i32_1 = arith.constant 0 : i32
    return %arg0, %c0_i32, %arg1, %c0_i32_0 : i32, i32, i32, i32
  }
  func.func @transform_1(%arg0: i32, %arg1: i32) -> (i32, i32, i32, i32) {
    %c0_i32 = arith.constant 0 : i32
    %c0_i32_0 = arith.constant 0 : i32
    %c0_i32_1 = arith.constant 0 : i32
    %c0_i32_2 = arith.constant 0 : i32
    return %arg0, %c0_i32, %c0_i32_0, %c0_i32_1 : i32, i32, i32, i32
  }
  func.func @transform_2(%arg0: i32, %arg1: i32) -> (i32, i32, i32, i32) {
    %c0_i32 = arith.constant 0 : i32
    %c0_i32_0 = arith.constant 0 : i32
    %c0_i32_1 = arith.constant 0 : i32
    return %arg0, %c0_i32, %arg1, %c0_i32_0 : i32, i32, i32, i32
  }
  func.func @transform_3(%arg0: i32, %arg1: i32) -> (i32, i32, i32, i32) {
    %c0_i32 = arith.constant 0 : i32
    %c0_i32_0 = arith.constant 0 : i32
    %c0_i32_1 = arith.constant 0 : i32
    %c0_i32_2 = arith.constant 0 : i32
    return %arg0, %c0_i32, %c0_i32_0, %c0_i32_1 : i32, i32, i32, i32
  }
  func.func @transform_4(%arg0: i32, %arg1: i32) -> (i32, i32, i32, i32) {
    %c0_i32 = arith.constant 0 : i32
    %c0_i32_0 = arith.constant 0 : i32
    %c0_i32_1 = arith.constant 0 : i32
    return %arg0, %c0_i32, %arg1, %c0_i32_0 : i32, i32, i32, i32
  }
}

</mosaic_0001>

<llo_original>
// kernel: tpu_custom_call.1
$region0: #{tpu_custom_call.1}
  #allocation0 [shape = 'u32[]', space=smem, size = 0x4, offset = 0x4, fixed_abs, tag = 'smem constant byte address 0x4 - core index']
  #allocation1 [shape = 'u32[144,128]{1,0:T(1,128)}', space=vmem, size = 0x12000, scoped, tag = 'internal scratch']
  %s0 = inlined_call_operand.hbm [shape: bf16[2,4,8,32], index: 0, kind: input, shape index: {}]
  %s1 = inlined_call_operand.hbm [shape: bf16[2,4,8,32], index: 1, kind: input, shape index: {}]
  %s2 = inlined_call_operand.hbm [shape: bf16[2,4,8,8], index: 2, kind: input, shape index: {}]
  %s3 = inlined_call_operand.hbm [shape: bf16[2,4,8,32], index: 3, kind: input, shape index: {}]
  %s4 = inlined_call_operand.hbm [shape: bf16[2,4,256], index: 4, kind: output, shape index: {}]
  %s5 = sld [smem:[#allocation0]]
  $region65: #{tpu_custom_call.1} parent=0
    _
  %s7 = ssub.s32 1, %s5
  %s8 = scalar_select 0, %s7, %s5
  $region1: #{tpu_custom_call.1} parent=0
    #allocation2 [shape = 'u8[16384]{0}', space=vmem, size = 0x4000, scoped, tag = 'input window, operand 0']
    #allocation3 [shape = 's32[2]{0}', space=sflag, size = 0x8, scoped, tag = 'scoped memory for tpu_custom_call.1']
    #allocation4 [shape = 's32[2]{0}', space=sflag, size = 0x8, scoped, tag = 'scoped memory for tpu_custom_call.1']
    #allocation5 [shape = 'u8[16384]{0}', space=vmem, size = 0x4000, scoped, tag = 'input window, operand 1']
    #allocation6 [shape = 's32[2]{0}', space=sflag, size = 0x8, scoped, tag = 'scoped memory for tpu_custom_call.1']
    #allocation7 [shape = 'u8[16384]{0}', space=vmem, size = 0x4000, scoped, tag = 'input window, operand 2']
    #allocation8 [shape = 'u8[16384]{0}', space=vmem, size = 0x4000, scoped, tag = 'input window, operand 3']
    #allocation9 [shape = 's32[2]{0}', space=sflag, size = 0x8, scoped, tag = 'scoped memory for tpu_custom_call.1']
    #allocation10 [shape = 'u8[4096]{0}', space=vmem, size = 0x1000, scoped, tag = 'output window, operand 0']
    %9 = vsyncpa [#allocation3], 0
    %s10 = scalar_lea.sflag [#allocation3], 1
    %11 = vsyncpa %s10, 0
    %12 = vsyncpa [#allocation6], 0
    %s13 = scalar_lea.sflag [#allocation6], 1
    %14 = vsyncpa %s13, 0
    %15 = vsyncpa [#allocation9], 0
    %s16 = scalar_lea.sflag [#allocation9], 1
    %17 = vsyncpa %s16, 0
    %18 = vsyncpa [#allocation4], 0
    %s19 = scalar_lea.sflag [#allocation4], 1
    %20 = vsyncpa %s19, 0
    loop: start=0, step=1, limit=4
    $region2: #{tpu_custom_call.1} parent=1 // loop_pre_header
      _
    $region3: #{tpu_custom_call.1} parent=1 // loop_header
      %s22 = sphi 0, %s26
      %p23 = scmp.ge.s32.totalorder %s22, 4
      %s29 = sphi 0, %s41
      %s30 = sphi 0, %s37
      %s31 = sphi 0, %s29
      %s32 = sphi 0, %s30
      %s33 = sphi 0, %s31
      %s34 = sphi 0, %s32
      %s46 = sphi 0, %s48
      %s49 = sphi 0, %s46
      %s50 = sphi 0, %s49
      %s66 = sphi 0, %s50
      %s72 = sphi 0, %s74
      %s75 = sphi 0, %s72
      %s76 = sphi 0, %s75
      %s92 = sphi 0, %s76
      %s100 = sphi 0, %s102
      %s103 = sphi 0, %s100
      %s104 = sphi 0, %s103
      %s120 = sphi 0, %s104
      %s126 = sphi 0, %s128
      %s129 = sphi 0, %s126
      %s130 = sphi 0, %s129
      %s146 = sphi 0, %s130
      %s154 = sphi 0, %s156
      %s157 = sphi 0, %s154
      %s158 = sphi 0, %s157
      %s174 = sphi 0, %s158
    $region4: #{tpu_custom_call.1} parent=1 // loop_header_branch
      %25 = sbr.rel (%p23) target = $region8
    $region5: #{tpu_custom_call.1} parent=1 // loop_body
      %s27 = ssub.s32 %s22, 1
      %s28 = ssub.s32 %s22, 2
      %s35 = sadd.s32 1, %s30
      %p36 = scmp.ge.s32.totalorder %s35, 1
      %s37 = scalar_select %p36, 0, %s35
      %s38 = sadd.s32 1, %s29
      %s39 = scalar_select %p36, %s38, %s29
      %p40 = scmp.ge.s32.totalorder %s39, 2
      %s41 = scalar_select %p40, 0, %s39
      %s42 = ssub.s32 %s29, %s41
      %s43 = ssub.s32 %s30, %s37
      %s44 = sor.u32 %s42, %s43
      %p45 = scmp.eq.s32.totalorder %s44, 0
      %s47 = sadd.s32 %s46, 1
      %s48 = scalar_select %p45, %s46, %s47
      %p51 = pneg %p45
      %p52 = scmp.eq.s32.totalorder %s22, 1
      %p53 = por %p51, %p52
      %p54 = scmp.ne.s32.totalorder %s46, %s49
      %p55 = scmp.eq.s32.totalorder %s22, 0
      %p56 = por %p54, %p55
      %p57 = scmp.ne.s32.totalorder %s46, %s49
      %p58 = scmp.eq.s32.totalorder %s27, 1
      %p59 = por %p57, %p58
      %p60 = scmp.ne.s32.totalorder %s49, %s50
      %p61 = scmp.eq.s32.totalorder %s27, 0
      %p62 = por %p60, %p61
      %p63 = scmp.ne.s32.totalorder %s49, %s50
      %p64 = scmp.eq.s32.totalorder %s28, 1
      %p65 = por %p63, %p64
      %p67 = scmp.ne.s32.totalorder %s50, %s66
      %p68 = scmp.eq.s32.totalorder %s28, 0
      %p69 = por %p67, %p68
      %s70 = ssub.s32 %s29, %s41
      %p71 = scmp.eq.s32.totalorder %s70, 0
      %s73 = sadd.s32 %s72, 1
      %s74 = scalar_select %p71, %s72, %s73
      %p77 = pneg %p71
      %p78 = scmp.eq.s32.totalorder %s22, 1
      %p79 = por %p77, %p78
      %p80 = scmp.ne.s32.totalorder %s72, %s75
      %p81 = scmp.eq.s32.totalorder %s22, 0
      %p82 = por %p80, %p81
      %p83 = scmp.ne.s32.totalorder %s72, %s75
      %p84 = scmp.eq.s32.totalorder %s27, 1
      %p85 = por %p83, %p84
      %p86 = scmp.ne.s32.totalorder %s75, %s76
      %p87 = scmp.eq.s32.totalorder %s27, 0
      %p88 = por %p86, %p87
      %p89 = scmp.ne.s32.totalorder %s75, %s76
      %p90 = scmp.eq.s32.totalorder %s28, 1
      %p91 = por %p89, %p90
      %p93 = scmp.ne.s32.totalorder %s76, %s92
      %p94 = scmp.eq.s32.totalorder %s28, 0
      %p95 = por %p93, %p94
      %s96 = ssub.s32 %s29, %s41
      %s97 = ssub.s32 %s30, %s37
      %s98 = sor.u32 %s96, %s97
      %p99 = scmp.eq.s32.totalorder %s98, 0
      %s101 = sadd.s32 %s100, 1
      %s102 = scalar_select %p99, %s100, %s101
      %p105 = pneg %p99
      %p106 = scmp.eq.s32.totalorder %s22, 1
      %p107 = por %p105, %p106
      %p108 = scmp.ne.s32.totalorder %s100, %s103
      %p109 = scmp.eq.s32.totalorder %s22, 0
      %p110 = por %p108, %p109
      %p111 = scmp.ne.s32.totalorder %s100, %s103
      %p112 = scmp.eq.s32.totalorder %s27, 1
      %p113 = por %p111, %p112
      %p114 = scmp.ne.s32.totalorder %s103, %s104
      %p115 = scmp.eq.s32.totalorder %s27, 0
      %p116 = por %p114, %p115
      %p117 = scmp.ne.s32.totalorder %s103, %s104
      %p118 = scmp.eq.s32.totalorder %s28, 1
      %p119 = por %p117, %p118
      %p121 = scmp.ne.s32.totalorder %s104, %s120
      %p122 = scmp.eq.s32.totalorder %s28, 0
      %p123 = por %p121, %p122
      %s124 = ssub.s32 %s29, %s41
      %p125 = scmp.eq.s32.totalorder %s124, 0
      %s127 = sadd.s32 %s126, 1
      %s128 = scalar_select %p125, %s126, %s127
      %p131 = pneg %p125
      %p132 = scmp.eq.s32.totalorder %s22, 1
      %p133 = por %p131, %p132
      %p134 = scmp.ne.s32.totalorder %s126, %s129
      %p135 = scmp.eq.s32.totalorder %s22, 0
      %p136 = por %p134, %p135
      %p137 = scmp.ne.s32.totalorder %s126, %s129
      %p138 = scmp.eq.s32.totalorder %s27, 1
      %p139 = por %p137, %p138
      %p140 = scmp.ne.s32.totalorder %s129, %s130
      %p141 = scmp.eq.s32.totalorder %s27, 0
      %p142 = por %p140, %p141
      %p143 = scmp.ne.s32.totalorder %s129, %s130
      %p144 = scmp.eq.s32.totalorder %s28, 1
      %p145 = por %p143, %p144
      %p147 = scmp.ne.s32.totalorder %s130, %s146
      %p148 = scmp.eq.s32.totalorder %s28, 0
      %p149 = por %p147, %p148
      %s150 = ssub.s32 %s29, %s41
      %s151 = ssub.s32 %s30, %s37
      %s152 = sor.u32 %s150, %s151
      %p153 = scmp.eq.s32.totalorder %s152, 0
      %s155 = sadd.s32 %s154, 1
      %s156 = scalar_select %p153, %s154, %s155
      %p159 = pneg %p153
      %p160 = scmp.eq.s32.totalorder %s22, 1
      %p161 = por %p159, %p160
      %p162 = scmp.ne.s32.totalorder %s154, %s157
      %p163 = scmp.eq.s32.totalorder %s22, 0
      %p164 = por %p162, %p163
      %p165 = scmp.ne.s32.totalorder %s154, %s157
      %p166 = scmp.eq.s32.totalorder %s27, 1
      %p167 = por %p165, %p166
      %p168 = scmp.ne.s32.totalorder %s157, %s158
      %p169 = scmp.eq.s32.totalorder %s27, 0
      %p170 = por %p168, %p169
      %p171 = scmp.ne.s32.totalorder %s157, %s158
      %p172 = scmp.eq.s32.totalorder %s28, 1
      %p173 = por %p171, %p172
      %p175 = scmp.ne.s32.totalorder %s158, %s174
      %p176 = scmp.eq.s32.totalorder %s28, 0
      %p177 = por %p175, %p176
      %p178 = scmp.le.s32.totalorder 1, %s22
      %p179 = scmp.lt.s32.totalorder %s22, 3
      %p180 = pnand %p178, %p179
      %p181 = pneg %p180
      // Predicated region
      $region9: #{tpu_custom_call.1} parent=5 // pred_check
        _
      $region10: #{tpu_custom_call.1} parent=5 // pred_check_branch
        %183 = sbr.rel (%p180) target = $region12
      $region11: #{tpu_custom_call.1} parent=5 // pred_region
        %s184 = ssub.s32 %s22, 1
      $region12: #{tpu_custom_call.1} parent=5 // pred_fallthru
        _
      %p185 = scmp.lt.s32.totalorder %s22, 2
      // Predicated region
      $region13: #{tpu_custom_call.1} parent=5 // pred_check
        %p186 = pneg %p185
      $region14: #{tpu_custom_call.1} parent=5 // pred_check_branch
        %188 = sbr.rel (%p186) target = $region16
      $region15: #{tpu_custom_call.1} parent=5 // pred_region
        // Predicated region
        $region17: #{tpu_custom_call.1} parent=15 // pred_check
          %p189 = pneg %p56
        $region18: #{tpu_custom_call.1} parent=15 // pred_check_branch
          %191 = sbr.rel (%p189) target = $region20
        $region19: #{tpu_custom_call.1} parent=15 // pred_region
          %s192 = sand.u32 %s46, 1
          %s193 = scalar_lea.sflag [#allocation3], %s192
          %s194 = sand.u32 %s46, 1
          %s195 = smul.addr %s194, 16
          %s196 = scalar_lea.vmem [#allocation2], %s195
          %s198 = ssub.s32 256, 256
          %199 = vsyncadd %s193, %s198
          %s200 = smul.addr %s29, 4
          %s201 = sadd.s32 %s30, %s200
          %s202 = smul.addr %s201, 64
          %s203 = scalar_lea.hbm %s0, %s202
          %s204 = sshll.u32 %s196, 4
          %s205 = int_to_ptr.vmem [resolvable:$true] %s204
          %210 = dma.hbm_to_vmem [thread:$0]  %s203, 256, %s205, %s193, 64, 64, 4
        $region20: #{tpu_custom_call.1} parent=15 // pred_fallthru
          _
        // Predicated region
        $region21: #{tpu_custom_call.1} parent=15 // pred_check
          %p211 = pneg %p82
        $region22: #{tpu_custom_call.1} parent=15 // pred_check_branch
          %213 = sbr.rel (%p211) target = $region24
        $region23: #{tpu_custom_call.1} parent=15 // pred_region
          %s214 = sand.u32 %s22, 1
          %s215 = scalar_lea.sflag [#allocation6], %s214
          %s216 = sand.u32 %s72, 1
          %s217 = smul.addr %s216, 16
          %s218 = scalar_lea.vmem [#allocation5], %s217
          %s220 = ssub.s32 256, 256
          %221 = vsyncadd %s215, %s220
          %s222 = smul.addr %s29, 4
          %s223 = smul.addr %s222, 64
          %s224 = scalar_lea.hbm %s1, %s223
          %s225 = sshll.u32 %s218, 4
          %s226 = int_to_ptr.vmem [resolvable:$true] %s225
          %231 = dma.hbm_to_vmem [thread:$0]  %s224, 256, %s226, %s215, 64, 64, 4
        $region24: #{tpu_custom_call.1} parent=15 // pred_fallthru
          _
        // Predicated region
        $region25: #{tpu_custom_call.1} parent=15 // pred_check
          %p232 = pneg %p110
        $region26: #{tpu_custom_call.1} parent=15 // pred_check_branch
          %234 = sbr.rel (%p232) target = $region28
        $region27: #{tpu_custom_call.1} parent=15 // pred_region
          %s235 = sand.u32 %s22, 1
          %s236 = scalar_lea.sflag [#allocation6], %s235
          %s237 = sand.u32 %s100, 1
          %s238 = smul.addr %s237, 16
          %s239 = scalar_lea.vmem [#allocation7], %s238
          %s241 = ssub.s32 256, 256
          %242 = vsyncadd %s236, %s241
          %s243 = smul.addr %s29, 4
          %s244 = sadd.s32 %s30, %s243
          %s245 = smul.addr %s244, 64
          %s246 = scalar_lea.hbm %s2, %s245
          %s247 = sshll.u32 %s239, 4
          %s248 = int_to_ptr.vmem [resolvable:$true] %s247
          %253 = dma.hbm_to_vmem [thread:$0]  %s246, 256, %s248, %s236, 64, 64, 4
        $region28: #{tpu_custom_call.1} parent=15 // pred_fallthru
          _
        // Predicated region
        $region29: #{tpu_custom_call.1} parent=15 // pred_check
          %p254 = pneg %p136
        $region30: #{tpu_custom_call.1} parent=15 // pred_check_branch
          %256 = sbr.rel (%p254) target = $region32
        $region31: #{tpu_custom_call.1} parent=15 // pred_region
          %s257 = sand.u32 %s126, 1
          %s258 = scalar_lea.sflag [#allocation9], %s257
          %s259 = sand.u32 %s126, 1
          %s260 = smul.addr %s259, 16
          %s261 = scalar_lea.vmem [#allocation8], %s260
          %s263 = ssub.s32 256, 256
          %264 = vsyncadd %s258, %s263
          %s265 = smul.addr %s29, 4
          %s266 = smul.addr %s265, 64
          %s267 = scalar_lea.hbm %s3, %s266
          %s268 = sshll.u32 %s261, 4
          %s269 = int_to_ptr.vmem [resolvable:$true] %s268
          %274 = dma.hbm_to_vmem [thread:$0]  %s267, 256, %s269, %s258, 64, 64, 4
        $region32: #{tpu_custom_call.1} parent=15 // pred_fallthru
          _
      $region16: #{tpu_custom_call.1} parent=5 // pred_fallthru
        _
      %p275 = scmp.le.s32.totalorder 1, %s22
      %p276 = scmp.lt.s32.totalorder %s22, 3
      %p277 = pnand %p275, %p276
      %p278 = pneg %p277
      // Predicated region
      $region33: #{tpu_custom_call.1} parent=5 // pred_check
        _
      $region34: #{tpu_custom_call.1} parent=5 // pred_check_branch
        %280 = sbr.rel (%p277) target = $region36
      $region35: #{tpu_custom_call.1} parent=5 // pred_region
        %s281 = ssub.s32 %s22, 1
        %s282 = sand.u32 %s49, 1
        %s283 = scalar_lea.sflag [#allocation3], %s282
        %s284 = sand.u32 %s49, 1
        %s285 = smul.addr %s284, 16
        %s286 = scalar_lea.vmem [#allocation2], %s285
        // Predicated region
        $region37: #{tpu_custom_call.1} parent=35 // pred_check
          %p287 = pneg %p62
        $region38: #{tpu_custom_call.1} parent=35 // pred_check_branch
          %289 = sbr.rel (%p287) target = $region40
        $region39: #{tpu_custom_call.1} parent=35 // pred_region
          %290 = dma.done %s283, 256
        $region40: #{tpu_custom_call.1} parent=35 // pred_fallthru
          _
        %s291 = sand.u32 %s27, 1
        %s292 = scalar_lea.sflag [#allocation6], %s291
        %s293 = sand.u32 %s75, 1
        %s294 = smul.addr %s293, 16
        %s295 = scalar_lea.vmem [#allocation5], %s294
        // Predicated region
        $region41: #{tpu_custom_call.1} parent=35 // pred_check
          %p296 = pneg %p88
        $region42: #{tpu_custom_call.1} parent=35 // pred_check_branch
          %298 = sbr.rel (%p296) target = $region44
        $region43: #{tpu_custom_call.1} parent=35 // pred_region
          %299 = dma.done %s292, 256
        $region44: #{tpu_custom_call.1} parent=35 // pred_fallthru
          _
        %s300 = sand.u32 %s27, 1
        %s301 = scalar_lea.sflag [#allocation6], %s300
        %s302 = sand.u32 %s103, 1
        %s303 = smul.addr %s302, 16
        %s304 = scalar_lea.vmem [#allocation7], %s303
        // Predicated region
        $region45: #{tpu_custom_call.1} parent=35 // pred_check
          %p305 = pneg %p116
        $region46: #{tpu_custom_call.1} parent=35 // pred_check_branch
          %307 = sbr.rel (%p305) target = $region48
        $region47: #{tpu_custom_call.1} parent=35 // pred_region
          %308 = dma.done %s301, 256
        $region48: #{tpu_custom_call.1} parent=35 // pred_fallthru
          _
        %s309 = sand.u32 %s129, 1
        %s310 = scalar_lea.sflag [#allocation9], %s309
        %s311 = sand.u32 %s129, 1
        %s312 = smul.addr %s311, 16
        %s313 = scalar_lea.vmem [#allocation8], %s312
        // Predicated region
        $region49: #{tpu_custom_call.1} parent=35 // pred_check
          %p314 = pneg %p142
        $region50: #{tpu_custom_call.1} parent=35 // pred_check_branch
          %316 = sbr.rel (%p314) target = $region52
        $region51: #{tpu_custom_call.1} parent=35 // pred_region
          %317 = dma.done %s310, 256
        $region52: #{tpu_custom_call.1} parent=35 // pred_fallthru
          _
        %s318 = sand.u32 %s49, 1
        %s319 = scalar_lea.sflag [#allocation3], %s318
        %s320 = sand.u32 %s49, 1
        %s321 = smul.addr %s320, 16
        %s322 = scalar_lea.vmem [#allocation2], %s321
        %p323 = pneg %p62
        %p324 = pneg %p59
        %s325 = sand.u32 %s27, 1
        %s326 = scalar_lea.sflag [#allocation6], %s325
        %s327 = sand.u32 %s75, 1
        %s328 = smul.addr %s327, 16
        %s329 = scalar_lea.vmem [#allocation5], %s328
        %p330 = pneg %p88
        %p331 = pneg %p85
        %s332 = sand.u32 %s27, 1
        %s333 = scalar_lea.sflag [#allocation6], %s332
        %s334 = sand.u32 %s103, 1
        %s335 = smul.addr %s334, 16
        %s336 = scalar_lea.vmem [#allocation7], %s335
        %p337 = pneg %p116
        %p338 = pneg %p113
        %s339 = sand.u32 %s129, 1
        %s340 = scalar_lea.sflag [#allocation9], %s339
        %s341 = sand.u32 %s129, 1
        %s342 = smul.addr %s341, 16
        %s343 = scalar_lea.vmem [#allocation8], %s342
        %p344 = pneg %p142
        %p345 = pneg %p139
        %p346 = pneg %p170
        %p347 = pneg %p167
        %s348 = sand.u32 %s157, 1
        %s349 = scalar_lea.sflag [#allocation4], %s348
        %s350 = sand.u32 %s157, 1
        %s351 = smul.addr %s350, 4
        %s352 = scalar_lea.vmem [#allocation10], %s351
        %s353 = smul.u32 2, %s32
        %v355 = vld [vmem:[%s286] sm:$0xf]
        %v356 = vld [vmem:[%s286 + $0x4] sm:$0xf]
        %v357 = vld [vmem:[%s286 + $0x8] sm:$0xf]
        %v358 = vld [vmem:[%s286 + $0xc] sm:$0xf]
        %v359 = vld [vmem:[%s295] sm:$0xf]
        %v360 = vld [vmem:[%s295 + $0x4] sm:$0xf]
        %v361 = vld [vmem:[%s295 + $0x8] sm:$0xf]
        %v362 = vld [vmem:[%s295 + $0xc] sm:$0xf]
        %v363 = vld [vmem:[%s313] sm:$0xf]
        %v364 = vld [vmem:[%s313 + $0x4] sm:$0xf]
        %v365 = vld [vmem:[%s313 + $0x8] sm:$0xf]
        %v366 = vld [vmem:[%s313 + $0xc] sm:$0xf]
        %v367 = vld [vmem:[%s304] sm:$0xf]
        %v368 = vld [vmem:[%s304 + $0x4] sm:$0xf]
        %v369 = vld [vmem:[%s304 + $0x8] sm:$0xf]
        %v370 = vld [vmem:[%s304 + $0xc] sm:$0xf]
        %v371 = vunpack.c.l.bf16 %v367
        %v372 = vunpack.c.l.bf16 %v368
        %v373 = vunpack.c.l.bf16 %v369
        %v374 = vunpack.c.l.bf16 %v370
        %vm375 = vcmask 261120
        %v377 = vsel %vm375, %v355, 0
        %v380 = vsel %vm375, %v359, 0
        %382 = vmatprep.subr.bf16.mxu0 0
        %383 = vmatpush1.bf16.xpose.msra.mxu0 %v380
        %384 = vmatprep.subr.bf16.mxu0 0
        %385 = vmatpush1.bf16.xpose.msra.mxu0 0
        %386 = vmatprep.subr.bf16.mxu0 0
        %387 = vmatpush1.bf16.xpose.msra.mxu0 0
        %388 = vmatprep.subr.bf16.mxu0 0
        %389 = vmatpush1.bf16.xpose.msra.mxu0 0
        %390 = vmatprep.subr.bf16.mxu0 0
        %391 = vmatpush1.bf16.xpose.msra.mxu0 0
        %392 = vmatprep.subr.bf16.mxu0 0
        %393 = vmatpush1.bf16.xpose.msra.mxu0 0
        %394 = vmatprep.subr.bf16.mxu0 0
        %395 = vmatpush1.bf16.xpose.msra.mxu0 0
        %396 = vmatprep.subr.bf16.mxu0 0
        %397 = vmatpush1.bf16.xpose.msra.mxu0 0
        %398 = vmatprep.subr.bf16.mxu0 0
        %399 = vmatpush1.bf16.xpose.msra.mxu0 0
        %400 = vmatprep.subr.bf16.mxu0 0
        %401 = vmatpush1.bf16.xpose.msra.mxu0 0
        %402 = vmatprep.subr.bf16.mxu0 0
        %403 = vmatpush1.bf16.xpose.msra.mxu0 0
        %404 = vmatprep.subr.bf16.mxu0 0
        %405 = vmatpush1.bf16.xpose.msra.mxu0 0
        %406 = vmatprep.subr.bf16.mxu0 0
        %407 = vmatpush1.bf16.xpose.msra.mxu0 0
        %408 = vmatprep.subr.bf16.mxu0 0
        %409 = vmatpush1.bf16.xpose.msra.mxu0 0
        %410 = vmatprep.subr.bf16.mxu0 0
        %411 = vmatpush1.bf16.xpose.msra.mxu0 0
        %412 = vmatprep.subr.bf16.mxu0 0
        %413 = vmatpush1.bf16.xpose.msra.mxu0 0
        %414 = vmatprep.mubr.bf16.mxu0 0
        %415 = vmatmul.mubr.bf16.gmra.mrb[0].mxu0 %v377
        %v416 = vpop.f32.mrb[0].mxu0
        %v417 = vadd.f32 0.0, %v416
        %v418 = vpop.f32.mrb[0].mxu0
        %v419 = vpop.f32.mrb[0].mxu0
        %v420 = vpop.f32.mrb[0].mxu0
        %421 = vdwg.mxu0
        %v423 = vsel %vm375, %v356, 0
        %v426 = vsel %vm375, %v360, 0
        %428 = vmatprep.subr.bf16.mxu0 0
        %429 = vmatpush1.bf16.xpose.msra.mxu0 %v426
        %430 = vmatprep.subr.bf16.mxu0 0
        %431 = vmatpush1.bf16.xpose.msra.mxu0 0
        %432 = vmatprep.subr.bf16.mxu0 0
        %433 = vmatpush1.bf16.xpose.msra.mxu0 0
        %434 = vmatprep.subr.bf16.mxu0 0
        %435 = vmatpush1.bf16.xpose.msra.mxu0 0
        %436 = vmatprep.subr.bf16.mxu0 0
        %437 = vmatpush1.bf16.xpose.msra.mxu0 0
        %438 = vmatprep.subr.bf16.mxu0 0
        %439 = vmatpush1.bf16.xpose.msra.mxu0 0
        %440 = vmatprep.subr.bf16.mxu0 0
        %441 = vmatpush1.bf16.xpose.msra.mxu0 0
        %442 = vmatprep.subr.bf16.mxu0 0
        %443 = vmatpush1.bf16.xpose.msra.mxu0 0
        %444 = vmatprep.subr.bf16.mxu0 0
        %445 = vmatpush1.bf16.xpose.msra.mxu0 0
        %446 = vmatprep.subr.bf16.mxu0 0
        %447 = vmatpush1.bf16.xpose.msra.mxu0 0
        %448 = vmatprep.subr.bf16.mxu0 0
        %449 = vmatpush1.bf16.xpose.msra.mxu0 0
        %450 = vmatprep.subr.bf16.mxu0 0
        %451 = vmatpush1.bf16.xpose.msra.mxu0 0
        %452 = vmatprep.subr.bf16.mxu0 0
        %453 = vmatpush1.bf16.xpose.msra.mxu0 0
        %454 = vmatprep.subr.bf16.mxu0 0
        %455 = vmatpush1.bf16.xpose.msra.mxu0 0
        %456 = vmatprep.subr.bf16.mxu0 0
        %457 = vmatpush1.bf16.xpose.msra.mxu0 0
        %458 = vmatprep.subr.bf16.mxu0 0
        %459 = vmatpush1.bf16.xpose.msra.mxu0 0
        %460 = vmatprep.mubr.bf16.mxu0 0
        %461 = vmatmul.mubr.bf16.gmra.mrb[0].mxu0 %v423
        %v462 = vpop.f32.mrb[0].mxu0
        %v463 = vadd.f32 0.0, %v462
        %v464 = vpop.f32.mrb[0].mxu0
        %v465 = vpop.f32.mrb[0].mxu0
        %v466 = vpop.f32.mrb[0].mxu0
        %467 = vdwg.mxu0
        %v469 = vsel %vm375, %v357, 0
        %v472 = vsel %vm375, %v361, 0
        %474 = vmatprep.subr.bf16.mxu0 0
        %475 = vmatpush1.bf16.xpose.msra.mxu0 %v472
        %476 = vmatprep.subr.bf16.mxu0 0
        %477 = vmatpush1.bf16.xpose.msra.mxu0 0
        %478 = vmatprep.subr.bf16.mxu0 0
        %479 = vmatpush1.bf16.xpose.msra.mxu0 0
        %480 = vmatprep.subr.bf16.mxu0 0
        %481 = vmatpush1.bf16.xpose.msra.mxu0 0
        %482 = vmatprep.subr.bf16.mxu0 0
        %483 = vmatpush1.bf16.xpose.msra.mxu0 0
        %484 = vmatprep.subr.bf16.mxu0 0
        %485 = vmatpush1.bf16.xpose.msra.mxu0 0
        %486 = vmatprep.subr.bf16.mxu0 0
        %487 = vmatpush1.bf16.xpose.msra.mxu0 0
        %488 = vmatprep.subr.bf16.mxu0 0
        %489 = vmatpush1.bf16.xpose.msra.mxu0 0
        %490 = vmatprep.subr.bf16.mxu0 0
        %491 = vmatpush1.bf16.xpose.msra.mxu0 0
        %492 = vmatprep.subr.bf16.mxu0 0
        %493 = vmatpush1.bf16.xpose.msra.mxu0 0
        %494 = vmatprep.subr.bf16.mxu0 0
        %495 = vmatpush1.bf16.xpose.msra.mxu0 0
        %496 = vmatprep.subr.bf16.mxu0 0
        %497 = vmatpush1.bf16.xpose.msra.mxu0 0
        %498 = vmatprep.subr.bf16.mxu0 0
        %499 = vmatpush1.bf16.xpose.msra.mxu0 0
        %500 = vmatprep.subr.bf16.mxu0 0
        %501 = vmatpush1.bf16.xpose.msra.mxu0 0
        %502 = vmatprep.subr.bf16.mxu0 0
        %503 = vmatpush1.bf16.xpose.msra.mxu0 0
        %504 = vmatprep.subr.bf16.mxu0 0
        %505 = vmatpush1.bf16.xpose.msra.mxu0 0
        %506 = vmatprep.mubr.bf16.mxu0 0
        %507 = vmatmul.mubr.bf16.gmra.mrb[0].mxu0 %v469
        %v508 = vpop.f32.mrb[0].mxu0
        %v509 = vadd.f32 0.0, %v508
        %v510 = vpop.f32.mrb[0].mxu0
        %v511 = vpop.f32.mrb[0].mxu0
        %v512 = vpop.f32.mrb[0].mxu0
        %513 = vdwg.mxu0
        %v515 = vsel %vm375, %v358, 0
        %v518 = vsel %vm375, %v362, 0
        %520 = vmatprep.subr.bf16.mxu0 0
        %521 = vmatpush1.bf16.xpose.msra.mxu0 %v518
        %522 = vmatprep.subr.bf16.mxu0 0
        %523 = vmatpush1.bf16.xpose.msra.mxu0 0
        %524 = vmatprep.subr.bf16.mxu0 0
        %525 = vmatpush1.bf16.xpose.msra.mxu0 0
        %526 = vmatprep.subr.bf16.mxu0 0
        %527 = vmatpush1.bf16.xpose.msra.mxu0 0
        %528 = vmatprep.subr.bf16.mxu0 0
        %529 = vmatpush1.bf16.xpose.msra.mxu0 0
        %530 = vmatprep.subr.bf16.mxu0 0
        %531 = vmatpush1.bf16.xpose.msra.mxu0 0
        %532 = vmatprep.subr.bf16.mxu0 0
        %533 = vmatpush1.bf16.xpose.msra.mxu0 0
        %534 = vmatprep.subr.bf16.mxu0 0
        %535 = vmatpush1.bf16.xpose.msra.mxu0 0
        %536 = vmatprep.subr.bf16.mxu0 0
        %537 = vmatpush1.bf16.xpose.msra.mxu0 0
        %538 = vmatprep.subr.bf16.mxu0 0
        %539 = vmatpush1.bf16.xpose.msra.mxu0 0
        %540 = vmatprep.subr.bf16.mxu0 0
        %541 = vmatpush1.bf16.xpose.msra.mxu0 0
        %542 = vmatprep.subr.bf16.mxu0 0
        %543 = vmatpush1.bf16.xpose.msra.mxu0 0
        %544 = vmatprep.subr.bf16.mxu0 0
        %545 = vmatpush1.bf16.xpose.msra.mxu0 0
        %546 = vmatprep.subr.bf16.mxu0 0
        %547 = vmatpush1.bf16.xpose.msra.mxu0 0
        %548 = vmatprep.subr.bf16.mxu0 0
        %549 = vmatpush1.bf16.xpose.msra.mxu0 0
        %550 = vmatprep.subr.bf16.mxu0 0
        %551 = vmatpush1.bf16.xpose.msra.mxu0 0
        %552 = vmatprep.mubr.bf16.mxu0 0
        %553 = vmatmul.mubr.bf16.gmra.mrb[0].mxu0 %v515
        %v554 = vpop.f32.mrb[0].mxu0
        %v555 = vadd.f32 0.0, %v554
        %v556 = vpop.f32.mrb[0].mxu0
        %v557 = vpop.f32.mrb[0].mxu0
        %v558 = vpop.f32.mrb[0].mxu0
        %559 = vdwg.mxu0
        %v560 = vmul.f32 %v417, 0.17677669
        %v561 = vmul.f32 %v463, 0.17677669
        %v562 = vmul.f32 %v509, 0.17677669
        %v563 = vmul.f32 %v555, 0.17677669
        %v564 = vadd.f32 %v560, %v371
        %v565 = vadd.f32 %v561, %v372
        %v566 = vadd.f32 %v562, %v373
        %v567 = vadd.f32 %v563, %v374
        %vm568 = vcmask 64512
        %v569 = vsel %vm568, %v564, -inf
        %570 = vmax.xlane.f32.xlu0 %v569
        %v571 = vpop.xlane.xlu0 %570
        %v572 = vsel %vm568, %v565, -inf
        %573 = vmax.xlane.f32.xlu0 %v572
        %v574 = vpop.xlane.xlu0 %573
        %v575 = vsel %vm568, %v566, -inf
        %576 = vmax.xlane.f32.xlu0 %v575
        %v577 = vpop.xlane.xlu0 %576
        %v578 = vsel %vm568, %v567, -inf
        %579 = vmax.xlane.f32.xlu0 %v578
        %v580 = vpop.xlane.xlu0 %579
        %v581 = vsub.f32 %v564, %v571
        %v582 = vsub.f32 %v565, %v574
        %v583 = vsub.f32 %v566, %v577
        %v584 = vsub.f32 %v567, %v580
        %v585 = vmul.f32 %v581, 1.442695
        %v586 = vpow.pop %v585
        %v587 = vmul.f32 %v582, 1.442695
        %v588 = vpow.pop %v587
        %v589 = vmul.f32 %v583, 1.442695
        %v590 = vpow.pop %v589
        %v591 = vmul.f32 %v584, 1.442695
        %v592 = vpow.pop %v591
        %v593 = vsel %vm568, %v586, 0.0
        %594 = vadd.xlane.f32.xlu0 %v593
        %v595 = vpop.xlane.xlu0 %594
        %v596 = vsel %vm568, %v588, 0.0
        %597 = vadd.xlane.f32.xlu0 %v596
        %v598 = vpop.xlane.xlu0 %597
        %v599 = vsel %vm568, %v590, 0.0
        %600 = vadd.xlane.f32.xlu0 %v599
        %v601 = vpop.xlane.xlu0 %600
        %v602 = vsel %vm568, %v592, 0.0
        %603 = vadd.xlane.f32.xlu0 %v602
        %v604 = vpop.xlane.xlu0 %603
        %v605 = vpack.c.bf16 %v586, %v586
        %v606 = vpack.c.bf16 %v588, %v588
        %v607 = vpack.c.bf16 %v590, %v590
        %v608 = vpack.c.bf16 %v592, %v592
        %v610 = vsel %vm568, %v605, 0
        %vm612 = vcmask 1043456
        %v614 = vsel %vm612, %v363, 0
        %616 = vmatprep.subr.bf16.mxu0 0
        %617 = vmatpush1.bf16.msra.mxu0 %v614
        %618 = vmatprep.subr.bf16.mxu0 0
        %619 = vmatpush1.bf16.msra.mxu0 0
        %620 = vmatprep.subr.bf16.mxu0 0
        %621 = vmatpush1.bf16.msra.mxu0 0
        %622 = vmatprep.subr.bf16.mxu0 0
        %623 = vmatpush1.bf16.msra.mxu0 0
        %624 = vmatprep.subr.bf16.mxu0 0
        %625 = vmatpush1.bf16.msra.mxu0 0
        %626 = vmatprep.subr.bf16.mxu0 0
        %627 = vmatpush1.bf16.msra.mxu0 0
        %628 = vmatprep.subr.bf16.mxu0 0
        %629 = vmatpush1.bf16.msra.mxu0 0
        %630 = vmatprep.subr.bf16.mxu0 0
        %631 = vmatpush1.bf16.msra.mxu0 0
        %632 = vmatprep.subr.bf16.mxu0 0
        %633 = vmatpush1.bf16.msra.mxu0 0
        %634 = vmatprep.subr.bf16.mxu0 0
        %635 = vmatpush1.bf16.msra.mxu0 0
        %636 = vmatprep.subr.bf16.mxu0 0
        %637 = vmatpush1.bf16.msra.mxu0 0
        %638 = vmatprep.subr.bf16.mxu0 0
        %639 = vmatpush1.bf16.msra.mxu0 0
        %640 = vmatprep.subr.bf16.mxu0 0
        %641 = vmatpush1.bf16.msra.mxu0 0
        %642 = vmatprep.subr.bf16.mxu0 0
        %643 = vmatpush1.bf16.msra.mxu0 0
        %644 = vmatprep.subr.bf16.mxu0 0
        %645 = vmatpush1.bf16.msra.mxu0 0
        %646 = vmatprep.subr.bf16.mxu0 0
        %647 = vmatpush1.bf16.msra.mxu0 0
        %648 = vmatprep.mubr.bf16.mxu0 0
        %649 = vmatmul.mubr.bf16.gmra.mrb[0].mxu0 %v610
        %v650 = vpop.f32.mrb[0].mxu0
        %v651 = vadd.f32 0.0, %v650
        %v652 = vpop.f32.mrb[0].mxu0
        %v653 = vpop.f32.mrb[0].mxu0
        %v654 = vpop.f32.mrb[0].mxu0
        %655 = vdwg.mxu0
        %v657 = vsel %vm568, %v606, 0
        %v660 = vsel %vm612, %v364, 0
        %662 = vmatprep.subr.bf16.mxu0 0
        %663 = vmatpush1.bf16.msra.mxu0 %v660
        %664 = vmatprep.subr.bf16.mxu0 0
        %665 = vmatpush1.bf16.msra.mxu0 0
        %666 = vmatprep.subr.bf16.mxu0 0
        %667 = vmatpush1.bf16.msra.mxu0 0
        %668 = vmatprep.subr.bf16.mxu0 0
        %669 = vmatpush1.bf16.msra.mxu0 0
        %670 = vmatprep.subr.bf16.mxu0 0
        %671 = vmatpush1.bf16.msra.mxu0 0
        %672 = vmatprep.subr.bf16.mxu0 0
        %673 = vmatpush1.bf16.msra.mxu0 0
        %674 = vmatprep.subr.bf16.mxu0 0
        %675 = vmatpush1.bf16.msra.mxu0 0
        %676 = vmatprep.subr.bf16.mxu0 0
        %677 = vmatpush1.bf16.msra.mxu0 0
        %678 = vmatprep.subr.bf16.mxu0 0
        %679 = vmatpush1.bf16.msra.mxu0 0
        %680 = vmatprep.subr.bf16.mxu0 0
        %681 = vmatpush1.bf16.msra.mxu0 0
        %682 = vmatprep.subr.bf16.mxu0 0
        %683 = vmatpush1.bf16.msra.mxu0 0
        %684 = vmatprep.subr.bf16.mxu0 0
        %685 = vmatpush1.bf16.msra.mxu0 0
        %686 = vmatprep.subr.bf16.mxu0 0
        %687 = vmatpush1.bf16.msra.mxu0 0
        %688 = vmatprep.subr.bf16.mxu0 0
        %689 = vmatpush1.bf16.msra.mxu0 0
        %690 = vmatprep.subr.bf16.mxu0 0
        %691 = vmatpush1.bf16.msra.mxu0 0
        %692 = vmatprep.subr.bf16.mxu0 0
        %693 = vmatpush1.bf16.msra.mxu0 0
        %694 = vmatprep.mubr.bf16.mxu0 0
        %695 = vmatmul.mubr.bf16.gmra.mrb[0].mxu0 %v657
        %v696 = vpop.f32.mrb[0].mxu0
        %v697 = vadd.f32 0.0, %v696
        %v698 = vpop.f32.mrb[0].mxu0
        %v699 = vpop.f32.mrb[0].mxu0
        %v700 = vpop.f32.mrb[0].mxu0
        %701 = vdwg.mxu0
        %v703 = vsel %vm568, %v607, 0
        %v706 = vsel %vm612, %v365, 0
        %708 = vmatprep.subr.bf16.mxu0 0
        %709 = vmatpush1.bf16.msra.mxu0 %v706
        %710 = vmatprep.subr.bf16.mxu0 0
        %711 = vmatpush1.bf16.msra.mxu0 0
        %712 = vmatprep.subr.bf16.mxu0 0
        %713 = vmatpush1.bf16.msra.mxu0 0
        %714 = vmatprep.subr.bf16.mxu0 0
        %715 = vmatpush1.bf16.msra.mxu0 0
        %716 = vmatprep.subr.bf16.mxu0 0
        %717 = vmatpush1.bf16.msra.mxu0 0
        %718 = vmatprep.subr.bf16.mxu0 0
        %719 = vmatpush1.bf16.msra.mxu0 0
        %720 = vmatprep.subr.bf16.mxu0 0
        %721 = vmatpush1.bf16.msra.mxu0 0
        %722 = vmatprep.subr.bf16.mxu0 0
        %723 = vmatpush1.bf16.msra.mxu0 0
        %724 = vmatprep.subr.bf16.mxu0 0
        %725 = vmatpush1.bf16.msra.mxu0 0
        %726 = vmatprep.subr.bf16.mxu0 0
        %727 = vmatpush1.bf16.msra.mxu0 0
        %728 = vmatprep.subr.bf16.mxu0 0
        %729 = vmatpush1.bf16.msra.mxu0 0
        %730 = vmatprep.subr.bf16.mxu0 0
        %731 = vmatpush1.bf16.msra.mxu0 0
        %732 = vmatprep.subr.bf16.mxu0 0
        %733 = vmatpush1.bf16.msra.mxu0 0
        %734 = vmatprep.subr.bf16.mxu0 0
        %735 = vmatpush1.bf16.msra.mxu0 0
        %736 = vmatprep.subr.bf16.mxu0 0
        %737 = vmatpush1.bf16.msra.mxu0 0
        %738 = vmatprep.subr.bf16.mxu0 0
        %739 = vmatpush1.bf16.msra.mxu0 0
        %740 = vmatprep.mubr.bf16.mxu0 0
        %741 = vmatmul.mubr.bf16.gmra.mrb[0].mxu0 %v703
        %v742 = vpop.f32.mrb[0].mxu0
        %v743 = vadd.f32 0.0, %v742
        %v744 = vpop.f32.mrb[0].mxu0
        %v745 = vpop.f32.mrb[0].mxu0
        %v746 = vpop.f32.mrb[0].mxu0
        %747 = vdwg.mxu0
        %v749 = vsel %vm568, %v608, 0
        %v752 = vsel %vm612, %v366, 0
        %754 = vmatprep.subr.bf16.mxu0 0
        %755 = vmatpush1.bf16.msra.mxu0 %v752
        %756 = vmatprep.subr.bf16.mxu0 0
        %757 = vmatpush1.bf16.msra.mxu0 0
        %758 = vmatprep.subr.bf16.mxu0 0
        %759 = vmatpush1.bf16.msra.mxu0 0
        %760 = vmatprep.subr.bf16.mxu0 0
        %761 = vmatpush1.bf16.msra.mxu0 0
        %762 = vmatprep.subr.bf16.mxu0 0
        %763 = vmatpush1.bf16.msra.mxu0 0
        %764 = vmatprep.subr.bf16.mxu0 0
        %765 = vmatpush1.bf16.msra.mxu0 0
        %766 = vmatprep.subr.bf16.mxu0 0
        %767 = vmatpush1.bf16.msra.mxu0 0
        %768 = vmatprep.subr.bf16.mxu0 0
        %769 = vmatpush1.bf16.msra.mxu0 0
        %770 = vmatprep.subr.bf16.mxu0 0
        %771 = vmatpush1.bf16.msra.mxu0 0
        %772 = vmatprep.subr.bf16.mxu0 0
        %773 = vmatpush1.bf16.msra.mxu0 0
        %774 = vmatprep.subr.bf16.mxu0 0
        %775 = vmatpush1.bf16.msra.mxu0 0
        %776 = vmatprep.subr.bf16.mxu0 0
        %777 = vmatpush1.bf16.msra.mxu0 0
        %778 = vmatprep.subr.bf16.mxu0 0
        %779 = vmatpush1.bf16.msra.mxu0 0
        %780 = vmatprep.subr.bf16.mxu0 0
        %781 = vmatpush1.bf16.msra.mxu0 0
        %782 = vmatprep.subr.bf16.mxu0 0
        %783 = vmatpush1.bf16.msra.mxu0 0
        %784 = vmatprep.subr.bf16.mxu0 0
        %785 = vmatpush1.bf16.msra.mxu0 0
        %786 = vmatprep.mubr.bf16.mxu0 0
        %787 = vmatmul.mubr.bf16.gmra.mrb[0].mxu0 %v749
        %v788 = vpop.f32.mrb[0].mxu0
        %v789 = vadd.f32 0.0, %v788
        %v790 = vpop.f32.mrb[0].mxu0
        %v791 = vpop.f32.mrb[0].mxu0
        %v792 = vpop.f32.mrb[0].mxu0
        %793 = vdwg.mxu0
        %v794 = vrcp.pop %v595
        %v795 = vrcp.pop %v598
        %v796 = vrcp.pop %v601
        %v797 = vrcp.pop %v604
        %v798 = vmul.f32 %v651, %v794
        %v799 = vmul.f32 %v697, %v795
        %v800 = vmul.f32 %v743, %v796
        %v801 = vmul.f32 %v789, %v797
        %v802 = vcombine.low %v798, %v800
        %v803 = vcombine.high %v798, %v800
        %v805 = vunpack.c.l.s4 1983009808
        %v806 = vunpack.c.0.s8 %v805
        %v807 = vlaneseq
        %v808 = vshrl.u32 %v807, 7
        %v809 = vsub.s32 %v806, %v808
        %v810 = vrot.slane %v802, %v809
        %v812 = vunpack.c.l.s4 1983009808
        %v813 = vunpack.c.0.s8 %v812
        %v814 = vlaneseq
        %v815 = vshrl.u32 %v814, 7
        %v816 = vsub.s32 %v813, %v815
        %v817 = vrot.slane %v803, %v816
        %v818 = vcombine.low %v799, %v801
        %v819 = vcombine.high %v799, %v801
        %v821 = vunpack.c.l.s4 1983009808
        %v822 = vunpack.c.0.s8 %v821
        %v823 = vlaneseq
        %v824 = vshrl.u32 %v823, 7
        %v825 = vsub.s32 %v822, %v824
        %v826 = vrot.slane %v818, %v825
        %v828 = vunpack.c.l.s4 1983009808
        %v829 = vunpack.c.0.s8 %v828
        %v830 = vlaneseq
        %v831 = vshrl.u32 %v830, 7
        %v832 = vsub.s32 %v829, %v831
        %v833 = vrot.slane %v819, %v832
        %v834 = vcombine.low %v810, %v826
        %v835 = vcombine.high %v810, %v826
        %v837 = vunpack.c.l.s4 1934713408
        %v838 = vunpack.c.0.s8 %v837
        %v839 = vlaneseq
        %v840 = vshrl.u32 %v839, 7
        %v841 = vsub.s32 %v838, %v840
        %v842 = vrot.slane %v834, %v841
        %v844 = vunpack.c.l.s4 1934713408
        %v845 = vunpack.c.0.s8 %v844
        %v846 = vlaneseq
        %v847 = vshrl.u32 %v846, 7
        %v848 = vsub.s32 %v845, %v847
        %v849 = vrot.slane %v835, %v848
        %v850 = vcombine.low %v817, %v833
        %v851 = vcombine.high %v817, %v833
        %v853 = vunpack.c.l.s4 1934713408
        %v854 = vunpack.c.0.s8 %v853
        %v855 = vlaneseq
        %v856 = vshrl.u32 %v855, 7
        %v857 = vsub.s32 %v854, %v856
        %v858 = vrot.slane %v850, %v857
        %v860 = vunpack.c.l.s4 1934713408
        %v861 = vunpack.c.0.s8 %v860
        %v862 = vlaneseq
        %v863 = vshrl.u32 %v862, 7
        %v864 = vsub.s32 %v861, %v863
        %v865 = vrot.slane %v851, %v864
        %v866 = vcombine.high %v842, 0.0
        %v867 = vcombine.high %v849, 0.0
        %v868 = vcombine.high %v858, 0.0
        %v869 = vcombine.high %v865, 0.0
        %871 = vrot.lane.b32.xlu0 %v866, 32
        %v872 = vpop.permute.xlu0 %871
        %875 = vrot.lane.b32.xlu0 %v849, 64
        %v876 = vpop.permute.xlu0 %875
        %879 = vrot.lane.b32.xlu0 %v867, 96
        %v880 = vpop.permute.xlu0 %879
        %883 = vrot.lane.b32.xlu0 %v868, 32
        %v884 = vpop.permute.xlu0 %883
        %887 = vrot.lane.b32.xlu0 %v865, 64
        %v888 = vpop.permute.xlu0 %887
        %891 = vrot.lane.b32.xlu0 %v869, 96
        %v892 = vpop.permute.xlu0 %891
        %v894 = vsel %vm375, %v842, %v872
        %vm895 = vcmask 523264
        %v896 = vsel %vm895, %v894, %v876
        %vm897 = vcmask 785408
        %v898 = vsel %vm897, %v896, %v880
        %v899 = vsel %vm375, %v858, %v884
        %v900 = vsel %vm895, %v899, %v888
        %v901 = vsel %vm897, %v900, %v892
        %v902 = vpack.c.bf16 %v898, %v898
        %v903 = vpack.c.bf16 %v901, %v901
        %v906 = vcombine.low %v902, %v903
        %v908 = vunpack.c.l.s4 1983009808
        %v909 = vunpack.c.0.s8 %v908
        %v910 = vlaneseq
        %v911 = vshrl.u32 %v910, 7
        %v912 = vsub.s32 %v909, %v911
        %v913 = vrot.slane %v906, %v912
        %915 = vst [vmem:[%s352] sm:$0xf] %v913
        %s916 = sand.u32 %s157, 1
        %s917 = scalar_lea.sflag [#allocation4], %s916
        %s918 = sand.u32 %s157, 1
        %s919 = smul.addr %s918, 4
        %s920 = scalar_lea.vmem [#allocation10], %s919
        // Predicated region
        $region53: #{tpu_custom_call.1} parent=35 // pred_check
          %p921 = pneg %p167
        $region54: #{tpu_custom_call.1} parent=35 // pred_check_branch
          %923 = sbr.rel (%p921) target = $region56
        $region55: #{tpu_custom_call.1} parent=35 // pred_region
          %s924 = smul.u32 2, %s32
          %s926 = ssub.s32 64, 64
          %927 = vsyncadd %s917, %s926
          %s928 = smul.addr %s31, 2
          %s929 = sadd.s32 %s924, %s928
          %s930 = smul.addr %s929, 32
          %s931 = scalar_lea.hbm %s4, %s930
          %s933 = sshll.u32 %s920, 4
          %s934 = int_to_ptr.vmem [resolvable:$true] %s933
          %936 = dma.vmem_to_hbm [thread:$0]  %s934, 64, %s931, %s917
        $region56: #{tpu_custom_call.1} parent=35 // pred_fallthru
          _
      $region36: #{tpu_custom_call.1} parent=5 // pred_fallthru
        _
      %p937 = scmp.le.s32.totalorder 2, %s22
      // Predicated region
      $region57: #{tpu_custom_call.1} parent=5 // pred_check
        %p938 = pneg %p937
      $region58: #{tpu_custom_call.1} parent=5 // pred_check_branch
        %940 = sbr.rel (%p938) target = $region60
      $region59: #{tpu_custom_call.1} parent=5 // pred_region
        %s941 = ssub.s32 %s22, 2
        // Predicated region
        $region61: #{tpu_custom_call.1} parent=59 // pred_check
          %p942 = pneg %p173
        $region62: #{tpu_custom_call.1} parent=59 // pred_check_branch
          %944 = sbr.rel (%p942) target = $region64
        $region63: #{tpu_custom_call.1} parent=59 // pred_region
          %s945 = sand.u32 %s158, 1
          %s946 = scalar_lea.sflag [#allocation4], %s945
          %s947 = sand.u32 %s158, 1
          %s948 = smul.addr %s947, 4
          %s949 = scalar_lea.vmem [#allocation10], %s948
          %950 = dma.done %s946, 64
        $region64: #{tpu_custom_call.1} parent=59 // pred_fallthru
          _
      $region60: #{tpu_custom_call.1} parent=5 // pred_fallthru
        _
    $region6: #{tpu_custom_call.1} parent=1 // loop_footer
      %s26 = sadd.s32 1, %s22
    $region7: #{tpu_custom_call.1} parent=1 // loop_footer_branch
      %21 = sbr.rel target = $region3
    $region8: #{tpu_custom_call.1} parent=1 // loop_exit
      _
    %951 = vsyncpa [#allocation3], 1
    %s952 = scalar_lea.sflag [#allocation3], 1
    %953 = vsyncpa %s952, 1
    %954 = vsyncpa [#allocation6], 1
    %s955 = scalar_lea.sflag [#allocation6], 1
    %956 = vsyncpa %s955, 1
    %957 = vsyncpa [#allocation9], 1
    %s958 = scalar_lea.sflag [#allocation9], 1
    %959 = vsyncpa %s958, 1
    %960 = vsyncpa [#allocation4], 1
    %s961 = scalar_lea.sflag [#allocation4], 1
    %962 = vsyncpa %s961, 1

// kernel: tpu_custom_call.1
$region0: #{tpu_custom_call.1}
  #allocation0 [shape = 'u32[]', space=smem, size = 0x4, offset = 0x4, fixed_abs, tag = 'smem constant byte address 0x4 - core index']
  #allocation1 [shape = 'u32[144,128]{1,0:T(1,128)}', space=vmem, size = 0x12000, scoped, tag = 'internal scratch']
  %s0 = inlined_call_operand.hbm [shape: bf16[2,4,8,32], index: 0, kind: input, shape index: {}]
  %s1 = inlined_call_operand.hbm [shape: bf16[2,4,8,32], index: 1, kind: input, shape index: {}]
  %s2 = inlined_call_operand.hbm [shape: bf16[2,4,8,8], index: 2, kind: input, shape index: {}]
  %s3 = inlined_call_operand.hbm [shape: bf16[2,4,8,32], index: 3, kind: input, shape index: {}]
  %s4 = inlined_call_operand.hbm [shape: bf16[2,4,8,32], index: 4, kind: output, shape index: {}]
  %s5 = sld [smem:[#allocation0]]
  $region65: #{tpu_custom_call.1} parent=0
    _
  %s7 = ssub.s32 1, %s5
  %s8 = scalar_select 0, %s7, %s5
  $region1: #{tpu_custom_call.1} parent=0
    #allocation2 [shape = 'u8[16384]{0}', space=vmem, size = 0x4000, scoped, tag = 'input window, operand 0']
    #allocation3 [shape = 's32[2]{0}', space=sflag, size = 0x8, scoped, tag = 'scoped memory for tpu_custom_call.1']
    #allocation4 [shape = 's32[2]{0}', space=sflag, size = 0x8, scoped, tag = 'scoped memory for tpu_custom_call.1']
    #allocation5 [shape = 'u8[16384]{0}', space=vmem, size = 0x4000, scoped, tag = 'input window, operand 1']
    #allocation6 [shape = 's32[2]{0}', space=sflag, size = 0x8, scoped, tag = 'scoped memory for tpu_custom_call.1']
    #allocation7 [shape = 'u8[16384]{0}', space=vmem, size = 0x4000, scoped, tag = 'input window, operand 2']
    #allocation8 [shape = 'u8[16384]{0}', space=vmem, size = 0x4000, scoped, tag = 'input window, operand 3']
    #allocation9 [shape = 's32[2]{0}', space=sflag, size = 0x8, scoped, tag = 'scoped memory for tpu_custom_call.1']
    #allocation10 [shape = 'u8[16384]{0}', space=vmem, size = 0x4000, scoped, tag = 'output window, operand 0']
    %9 = vsyncpa [#allocation3], 0
    %s10 = scalar_lea.sflag [#allocation3], 1
    %11 = vsyncpa %s10, 0
    %12 = vsyncpa [#allocation6], 0
    %s13 = scalar_lea.sflag [#allocation6], 1
    %14 = vsyncpa %s13, 0
    %15 = vsyncpa [#allocation9], 0
    %s16 = scalar_lea.sflag [#allocation9], 1
    %17 = vsyncpa %s16, 0
    %18 = vsyncpa [#allocation4], 0
    %s19 = scalar_lea.sflag [#allocation4], 1
    %20 = vsyncpa %s19, 0
    loop: start=0, step=1, limit=4
    $region2: #{tpu_custom_call.1} parent=1 // loop_pre_header
      _
    $region3: #{tpu_custom_call.1} parent=1 // loop_header
      %s22 = sphi 0, %s26
      %p23 = scmp.ge.s32.totalorder %s22, 4
      %s29 = sphi 0, %s41
      %s30 = sphi 0, %s37
      %s31 = sphi 0, %s29
      %s32 = sphi 0, %s30
      %s33 = sphi 0, %s31
      %s34 = sphi 0, %s32
      %s46 = sphi 0, %s48
      %s49 = sphi 0, %s46
      %s50 = sphi 0, %s49
      %s66 = sphi 0, %s50
      %s72 = sphi 0, %s74
      %s75 = sphi 0, %s72
      %s76 = sphi 0, %s75
      %s92 = sphi 0, %s76
      %s100 = sphi 0, %s102
      %s103 = sphi 0, %s100
      %s104 = sphi 0, %s103
      %s120 = sphi 0, %s104
      %s126 = sphi 0, %s128
      %s129 = sphi 0, %s126
      %s130 = sphi 0, %s129
      %s146 = sphi 0, %s130
      %s154 = sphi 0, %s156
      %s157 = sphi 0, %s154
      %s158 = sphi 0, %s157
      %s174 = sphi 0, %s158
    $region4: #{tpu_custom_call.1} parent=1 // loop_header_branch
      %25 = sbr.rel (%p23) target = $region8
    $region5: #{tpu_custom_call.1} parent=1 // loop_body
      %s27 = ssub.s32 %s22, 1
      %s28 = ssub.s32 %s22, 2
      %s35 = sadd.s32 1, %s30
      %p36 = scmp.ge.s32.totalorder %s35, 1
      %s37 = scalar_select %p36, 0, %s35
      %s38 = sadd.s32 1, %s29
      %s39 = scalar_select %p36, %s38, %s29
      %p40 = scmp.ge.s32.totalorder %s39, 2
      %s41 = scalar_select %p40, 0, %s39
      %s42 = ssub.s32 %s29, %s41
      %s43 = ssub.s32 %s30, %s37
      %s44 = sor.u32 %s42, %s43
      %p45 = scmp.eq.s32.totalorder %s44, 0
      %s47 = sadd.s32 %s46, 1
      %s48 = scalar_select %p45, %s46, %s47
      %p51 = pneg %p45
      %p52 = scmp.eq.s32.totalorder %s22, 1
      %p53 = por %p51, %p52
      %p54 = scmp.ne.s32.totalorder %s46, %s49
      %p55 = scmp.eq.s32.totalorder %s22, 0
      %p56 = por %p54, %p55
      %p57 = scmp.ne.s32.totalorder %s46, %s49
      %p58 = scmp.eq.s32.totalorder %s27, 1
      %p59 = por %p57, %p58
      %p60 = scmp.ne.s32.totalorder %s49, %s50
      %p61 = scmp.eq.s32.totalorder %s27, 0
      %p62 = por %p60, %p61
      %p63 = scmp.ne.s32.totalorder %s49, %s50
      %p64 = scmp.eq.s32.totalorder %s28, 1
      %p65 = por %p63, %p64
      %p67 = scmp.ne.s32.totalorder %s50, %s66
      %p68 = scmp.eq.s32.totalorder %s28, 0
      %p69 = por %p67, %p68
      %s70 = ssub.s32 %s29, %s41
      %p71 = scmp.eq.s32.totalorder %s70, 0
      %s73 = sadd.s32 %s72, 1
      %s74 = scalar_select %p71, %s72, %s73
      %p77 = pneg %p71
      %p78 = scmp.eq.s32.totalorder %s22, 1
      %p79 = por %p77, %p78
      %p80 = scmp.ne.s32.totalorder %s72, %s75
      %p81 = scmp.eq.s32.totalorder %s22, 0
      %p82 = por %p80, %p81
      %p83 = scmp.ne.s32.totalorder %s72, %s75
      %p84 = scmp.eq.s32.totalorder %s27, 1
      %p85 = por %p83, %p84
      %p86 = scmp.ne.s32.totalorder %s75, %s76
      %p87 = scmp.eq.s32.totalorder %s27, 0
      %p88 = por %p86, %p87
      %p89 = scmp.ne.s32.totalorder %s75, %s76
      %p90 = scmp.eq.s32.totalorder %s28, 1
      %p91 = por %p89, %p90
      %p93 = scmp.ne.s32.totalorder %s76, %s92
      %p94 = scmp.eq.s32.totalorder %s28, 0
      %p95 = por %p93, %p94
      %s96 = ssub.s32 %s29, %s41
      %s97 = ssub.s32 %s30, %s37
      %s98 = sor.u32 %s96, %s97
      %p99 = scmp.eq.s32.totalorder %s98, 0
      %s101 = sadd.s32 %s100, 1
      %s102 = scalar_select %p99, %s100, %s101
      %p105 = pneg %p99
      %p106 = scmp.eq.s32.totalorder %s22, 1
      %p107 = por %p105, %p106
      %p108 = scmp.ne.s32.totalorder %s100, %s103
      %p109 = scmp.eq.s32.totalorder %s22, 0
      %p110 = por %p108, %p109
      %p111 = scmp.ne.s32.totalorder %s100, %s103
      %p112 = scmp.eq.s32.totalorder %s27, 1
      %p113 = por %p111, %p112
      %p114 = scmp.ne.s32.totalorder %s103, %s104
      %p115 = scmp.eq.s32.totalorder %s27, 0
      %p116 = por %p114, %p115
      %p117 = scmp.ne.s32.totalorder %s103, %s104
      %p118 = scmp.eq.s32.totalorder %s28, 1
      %p119 = por %p117, %p118
      %p121 = scmp.ne.s32.totalorder %s104, %s120
      %p122 = scmp.eq.s32.totalorder %s28, 0
      %p123 = por %p121, %p122
      %s124 = ssub.s32 %s29, %s41
      %p125 = scmp.eq.s32.totalorder %s124, 0
      %s127 = sadd.s32 %s126, 1
      %s128 = scalar_select %p125, %s126, %s127
      %p131 = pneg %p125
      %p132 = scmp.eq.s32.totalorder %s22, 1
      %p133 = por %p131, %p132
      %p134 = scmp.ne.s32.totalorder %s126, %s129
      %p135 = scmp.eq.s32.totalorder %s22, 0
      %p136 = por %p134, %p135
      %p137 = scmp.ne.s32.totalorder %s126, %s129
      %p138 = scmp.eq.s32.totalorder %s27, 1
      %p139 = por %p137, %p138
      %p140 = scmp.ne.s32.totalorder %s129, %s130
      %p141 = scmp.eq.s32.totalorder %s27, 0
      %p142 = por %p140, %p141
      %p143 = scmp.ne.s32.totalorder %s129, %s130
      %p144 = scmp.eq.s32.totalorder %s28, 1
      %p145 = por %p143, %p144
      %p147 = scmp.ne.s32.totalorder %s130, %s146
      %p148 = scmp.eq.s32.totalorder %s28, 0
      %p149 = por %p147, %p148
      %s150 = ssub.s32 %s29, %s41
      %s151 = ssub.s32 %s30, %s37
      %s152 = sor.u32 %s150, %s151
      %p153 = scmp.eq.s32.totalorder %s152, 0
      %s155 = sadd.s32 %s154, 1
      %s156 = scalar_select %p153, %s154, %s155
      %p159 = pneg %p153
      %p160 = scmp.eq.s32.totalorder %s22, 1
      %p161 = por %p159, %p160
      %p162 = scmp.ne.s32.totalorder %s154, %s157
      %p163 = scmp.eq.s32.totalorder %s22, 0
      %p164 = por %p162, %p163
      %p165 = scmp.ne.s32.totalorder %s154, %s157
      %p166 = scmp.eq.s32.totalorder %s27, 1
      %p167 = por %p165, %p166
      %p168 = scmp.ne.s32.totalorder %s157, %s158
      %p169 = scmp.eq.s32.totalorder %s27, 0
      %p170 = por %p168, %p169
      %p171 = scmp.ne.s32.totalorder %s157, %s158
      %p172 = scmp.eq.s32.totalorder %s28, 1
      %p173 = por %p171, %p172
      %p175 = scmp.ne.s32.totalorder %s158, %s174
      %p176 = scmp.eq.s32.totalorder %s28, 0
      %p177 = por %p175, %p176
      %p178 = scmp.le.s32.totalorder 1, %s22
      %p179 = scmp.lt.s32.totalorder %s22, 3
      %p180 = pnand %p178, %p179
      %p181 = pneg %p180
      // Predicated region
      $region9: #{tpu_custom_call.1} parent=5 // pred_check
        _
      $region10: #{tpu_custom_call.1} parent=5 // pred_check_branch
        %183 = sbr.rel (%p180) target = $region12
      $region11: #{tpu_custom_call.1} parent=5 // pred_region
        %s184 = ssub.s32 %s22, 1
      $region12: #{tpu_custom_call.1} parent=5 // pred_fallthru
        _
      %p185 = scmp.lt.s32.totalorder %s22, 2
      // Predicated region
      $region13: #{tpu_custom_call.1} parent=5 // pred_check
        %p186 = pneg %p185
      $region14: #{tpu_custom_call.1} parent=5 // pred_check_branch
        %188 = sbr.rel (%p186) target = $region16
      $region15: #{tpu_custom_call.1} parent=5 // pred_region
        // Predicated region
        $region17: #{tpu_custom_call.1} parent=15 // pred_check
          %p189 = pneg %p56
        $region18: #{tpu_custom_call.1} parent=15 // pred_check_branch
          %191 = sbr.rel (%p189) target = $region20
        $region19: #{tpu_custom_call.1} parent=15 // pred_region
          %s192 = sand.u32 %s46, 1
          %s193 = scalar_lea.sflag [#allocation3], %s192
          %s194 = sand.u32 %s46, 1
          %s195 = smul.addr %s194, 16
          %s196 = scalar_lea.vmem [#allocation2], %s195
          %s198 = ssub.s32 256, 256
          %199 = vsyncadd %s193, %s198
          %s200 = smul.addr %s29, 4
          %s201 = sadd.s32 %s30, %s200
          %s202 = smul.addr %s201, 64
          %s203 = scalar_lea.hbm %s0, %s202
          %s204 = sshll.u32 %s196, 4
          %s205 = int_to_ptr.vmem [resolvable:$true] %s204
          %210 = dma.hbm_to_vmem [thread:$0]  %s203, 256, %s205, %s193, 64, 64, 4
        $region20: #{tpu_custom_call.1} parent=15 // pred_fallthru
          _
        // Predicated region
        $region21: #{tpu_custom_call.1} parent=15 // pred_check
          %p211 = pneg %p82
        $region22: #{tpu_custom_call.1} parent=15 // pred_check_branch
          %213 = sbr.rel (%p211) target = $region24
        $region23: #{tpu_custom_call.1} parent=15 // pred_region
          %s214 = sand.u32 %s22, 1
          %s215 = scalar_lea.sflag [#allocation6], %s214
          %s216 = sand.u32 %s72, 1
          %s217 = smul.addr %s216, 16
          %s218 = scalar_lea.vmem [#allocation5], %s217
          %s220 = ssub.s32 256, 256
          %221 = vsyncadd %s215, %s220
          %s222 = smul.addr %s29, 4
          %s223 = smul.addr %s222, 64
          %s224 = scalar_lea.hbm %s1, %s223
          %s225 = sshll.u32 %s218, 4
          %s226 = int_to_ptr.vmem [resolvable:$true] %s225
          %231 = dma.hbm_to_vmem [thread:$0]  %s224, 256, %s226, %s215, 64, 64, 4
        $region24: #{tpu_custom_call.1} parent=15 // pred_fallthru
          _
        // Predicated region
        $region25: #{tpu_custom_call.1} parent=15 // pred_check
          %p232 = pneg %p110
        $region26: #{tpu_custom_call.1} parent=15 // pred_check_branch
          %234 = sbr.rel (%p232) target = $region28
        $region27: #{tpu_custom_call.1} parent=15 // pred_region
          %s235 = sand.u32 %s22, 1
          %s236 = scalar_lea.sflag [#allocation6], %s235
          %s237 = sand.u32 %s100, 1
          %s238 = smul.addr %s237, 16
          %s239 = scalar_lea.vmem [#allocation7], %s238
          %s241 = ssub.s32 256, 256
          %242 = vsyncadd %s236, %s241
          %s243 = smul.addr %s29, 4
          %s244 = sadd.s32 %s30, %s243
          %s245 = smul.addr %s244, 64
          %s246 = scalar_lea.hbm %s2, %s245
          %s247 = sshll.u32 %s239, 4
          %s248 = int_to_ptr.vmem [resolvable:$true] %s247
          %253 = dma.hbm_to_vmem [thread:$0]  %s246, 256, %s248, %s236, 64, 64, 4
        $region28: #{tpu_custom_call.1} parent=15 // pred_fallthru
          _
        // Predicated region
        $region29: #{tpu_custom_call.1} parent=15 // pred_check
          %p254 = pneg %p136
        $region30: #{tpu_custom_call.1} parent=15 // pred_check_branch
          %256 = sbr.rel (%p254) target = $region32
        $region31: #{tpu_custom_call.1} parent=15 // pred_region
          %s257 = sand.u32 %s126, 1
          %s258 = scalar_lea.sflag [#allocation9], %s257
          %s259 = sand.u32 %s126, 1
          %s260 = smul.addr %s259, 16
          %s261 = scalar_lea.vmem [#allocation8], %s260
          %s263 = ssub.s32 256, 256
          %264 = vsyncadd %s258, %s263
          %s265 = smul.addr %s29, 4
          %s266 = smul.addr %s265, 64
          %s267 = scalar_lea.hbm %s3, %s266
          %s268 = sshll.u32 %s261, 4
          %s269 = int_to_ptr.vmem [resolvable:$true] %s268
          %274 = dma.hbm_to_vmem [thread:$0]  %s267, 256, %s269, %s258, 64, 64, 4
        $region32: #{tpu_custom_call.1} parent=15 // pred_fallthru
          _
      $region16: #{tpu_custom_call.1} parent=5 // pred_fallthru
        _
      %p275 = scmp.le.s32.totalorder 1, %s22
      %p276 = scmp.lt.s32.totalorder %s22, 3
      %p277 = pnand %p275, %p276
      %p278 = pneg %p277
      // Predicated region
      $region33: #{tpu_custom_call.1} parent=5 // pred_check
        _
      $region34: #{tpu_custom_call.1} parent=5 // pred_check_branch
        %280 = sbr.rel (%p277) target = $region36
      $region35: #{tpu_custom_call.1} parent=5 // pred_region
        %s281 = ssub.s32 %s22, 1
        %s282 = sand.u32 %s49, 1
        %s283 = scalar_lea.sflag [#allocation3], %s282
        %s284 = sand.u32 %s49, 1
        %s285 = smul.addr %s284, 16
        %s286 = scalar_lea.vmem [#allocation2], %s285
        // Predicated region
        $region37: #{tpu_custom_call.1} parent=35 // pred_check
          %p287 = pneg %p62
        $region38: #{tpu_custom_call.1} parent=35 // pred_check_branch
          %289 = sbr.rel (%p287) target = $region40
        $region39: #{tpu_custom_call.1} parent=35 // pred_region
          %290 = dma.done %s283, 256
        $region40: #{tpu_custom_call.1} parent=35 // pred_fallthru
          _
        %s291 = sand.u32 %s27, 1
        %s292 = scalar_lea.sflag [#allocation6], %s291
        %s293 = sand.u32 %s75, 1
        %s294 = smul.addr %s293, 16
        %s295 = scalar_lea.vmem [#allocation5], %s294
        // Predicated region
        $region41: #{tpu_custom_call.1} parent=35 // pred_check
          %p296 = pneg %p88
        $region42: #{tpu_custom_call.1} parent=35 // pred_check_branch
          %298 = sbr.rel (%p296) target = $region44
        $region43: #{tpu_custom_call.1} parent=35 // pred_region
          %299 = dma.done %s292, 256
        $region44: #{tpu_custom_call.1} parent=35 // pred_fallthru
          _
        %s300 = sand.u32 %s27, 1
        %s301 = scalar_lea.sflag [#allocation6], %s300
        %s302 = sand.u32 %s103, 1
        %s303 = smul.addr %s302, 16
        %s304 = scalar_lea.vmem [#allocation7], %s303
        // Predicated region
        $region45: #{tpu_custom_call.1} parent=35 // pred_check
          %p305 = pneg %p116
        $region46: #{tpu_custom_call.1} parent=35 // pred_check_branch
          %307 = sbr.rel (%p305) target = $region48
        $region47: #{tpu_custom_call.1} parent=35 // pred_region
          %308 = dma.done %s301, 256
        $region48: #{tpu_custom_call.1} parent=35 // pred_fallthru
          _
        %s309 = sand.u32 %s129, 1
        %s310 = scalar_lea.sflag [#allocation9], %s309
        %s311 = sand.u32 %s129, 1
        %s312 = smul.addr %s311, 16
        %s313 = scalar_lea.vmem [#allocation8], %s312
        // Predicated region
        $region49: #{tpu_custom_call.1} parent=35 // pred_check
          %p314 = pneg %p142
        $region50: #{tpu_custom_call.1} parent=35 // pred_check_branch
          %316 = sbr.rel (%p314) target = $region52
        $region51: #{tpu_custom_call.1} parent=35 // pred_region
          %317 = dma.done %s310, 256
        $region52: #{tpu_custom_call.1} parent=35 // pred_fallthru
          _
        %s318 = sand.u32 %s49, 1
        %s319 = scalar_lea.sflag [#allocation3], %s318
        %s320 = sand.u32 %s49, 1
        %s321 = smul.addr %s320, 16
        %s322 = scalar_lea.vmem [#allocation2], %s321
        %p323 = pneg %p62
        %p324 = pneg %p59
        %s325 = sand.u32 %s27, 1
        %s326 = scalar_lea.sflag [#allocation6], %s325
        %s327 = sand.u32 %s75, 1
        %s328 = smul.addr %s327, 16
        %s329 = scalar_lea.vmem [#allocation5], %s328
        %p330 = pneg %p88
        %p331 = pneg %p85
        %s332 = sand.u32 %s27, 1
        %s333 = scalar_lea.sflag [#allocation6], %s332
        %s334 = sand.u32 %s103, 1
        %s335 = smul.addr %s334, 16
        %s336 = scalar_lea.vmem [#allocation7], %s335
        %p337 = pneg %p116
        %p338 = pneg %p113
        %s339 = sand.u32 %s129, 1
        %s340 = scalar_lea.sflag [#allocation9], %s339
        %s341 = sand.u32 %s129, 1
        %s342 = smul.addr %s341, 16
        %s343 = scalar_lea.vmem [#allocation8], %s342
        %p344 = pneg %p142
        %p345 = pneg %p139
        %p346 = pneg %p170
        %p347 = pneg %p167
        %s348 = sand.u32 %s157, 1
        %s349 = scalar_lea.sflag [#allocation4], %s348
        %s350 = sand.u32 %s157, 1
        %s351 = smul.addr %s350, 16
        %s352 = scalar_lea.vmem [#allocation10], %s351
        %v354 = vld [vmem:[%s286] sm:$0xf]
        %v355 = vld [vmem:[%s286 + $0x4] sm:$0xf]
        %v356 = vld [vmem:[%s286 + $0x8] sm:$0xf]
        %v357 = vld [vmem:[%s286 + $0xc] sm:$0xf]
        %v358 = vld [vmem:[%s295] sm:$0xf]
        %v359 = vld [vmem:[%s295 + $0x4] sm:$0xf]
        %v360 = vld [vmem:[%s295 + $0x8] sm:$0xf]
        %v361 = vld [vmem:[%s295 + $0xc] sm:$0xf]
        %v362 = vld [vmem:[%s313] sm:$0xf]
        %v363 = vld [vmem:[%s313 + $0x4] sm:$0xf]
        %v364 = vld [vmem:[%s313 + $0x8] sm:$0xf]
        %v365 = vld [vmem:[%s313 + $0xc] sm:$0xf]
        %v366 = vld [vmem:[%s304] sm:$0xf]
        %v367 = vld [vmem:[%s304 + $0x4] sm:$0xf]
        %v368 = vld [vmem:[%s304 + $0x8] sm:$0xf]
        %v369 = vld [vmem:[%s304 + $0xc] sm:$0xf]
        %v370 = vunpack.c.l.bf16 %v366
        %v371 = vunpack.c.l.bf16 %v367
        %v372 = vunpack.c.l.bf16 %v368
        %v373 = vunpack.c.l.bf16 %v369
        %vm374 = vcmask 261120
        %v376 = vsel %vm374, %v354, 0
        %v379 = vsel %vm374, %v358, 0
        %381 = vmatprep.subr.bf16.mxu0 0
        %382 = vmatpush1.bf16.xpose.msra.mxu0 %v379
        %383 = vmatprep.subr.bf16.mxu0 0
        %384 = vmatpush1.bf16.xpose.msra.mxu0 0
        %385 = vmatprep.subr.bf16.mxu0 0
        %386 = vmatpush1.bf16.xpose.msra.mxu0 0
        %387 = vmatprep.subr.bf16.mxu0 0
        %388 = vmatpush1.bf16.xpose.msra.mxu0 0
        %389 = vmatprep.subr.bf16.mxu0 0
        %390 = vmatpush1.bf16.xpose.msra.mxu0 0
        %391 = vmatprep.subr.bf16.mxu0 0
        %392 = vmatpush1.bf16.xpose.msra.mxu0 0
        %393 = vmatprep.subr.bf16.mxu0 0
        %394 = vmatpush1.bf16.xpose.msra.mxu0 0
        %395 = vmatprep.subr.bf16.mxu0 0
        %396 = vmatpush1.bf16.xpose.msra.mxu0 0
        %397 = vmatprep.subr.bf16.mxu0 0
        %398 = vmatpush1.bf16.xpose.msra.mxu0 0
        %399 = vmatprep.subr.bf16.mxu0 0
        %400 = vmatpush1.bf16.xpose.msra.mxu0 0
        %401 = vmatprep.subr.bf16.mxu0 0
        %402 = vmatpush1.bf16.xpose.msra.mxu0 0
        %403 = vmatprep.subr.bf16.mxu0 0
        %404 = vmatpush1.bf16.xpose.msra.mxu0 0
        %405 = vmatprep.subr.bf16.mxu0 0
        %406 = vmatpush1.bf16.xpose.msra.mxu0 0
        %407 = vmatprep.subr.bf16.mxu0 0
        %408 = vmatpush1.bf16.xpose.msra.mxu0 0
        %409 = vmatprep.subr.bf16.mxu0 0
        %410 = vmatpush1.bf16.xpose.msra.mxu0 0
        %411 = vmatprep.subr.bf16.mxu0 0
        %412 = vmatpush1.bf16.xpose.msra.mxu0 0
        %413 = vmatprep.mubr.bf16.mxu0 0
        %414 = vmatmul.mubr.bf16.gmra.mrb[0].mxu0 %v376
        %v415 = vpop.f32.mrb[0].mxu0
        %v416 = vadd.f32 0.0, %v415
        %v417 = vpop.f32.mrb[0].mxu0
        %v418 = vpop.f32.mrb[0].mxu0
        %v419 = vpop.f32.mrb[0].mxu0
        %420 = vdwg.mxu0
        %v422 = vsel %vm374, %v355, 0
        %v425 = vsel %vm374, %v359, 0
        %427 = vmatprep.subr.bf16.mxu0 0
        %428 = vmatpush1.bf16.xpose.msra.mxu0 %v425
        %429 = vmatprep.subr.bf16.mxu0 0
        %430 = vmatpush1.bf16.xpose.msra.mxu0 0
        %431 = vmatprep.subr.bf16.mxu0 0
        %432 = vmatpush1.bf16.xpose.msra.mxu0 0
        %433 = vmatprep.subr.bf16.mxu0 0
        %434 = vmatpush1.bf16.xpose.msra.mxu0 0
        %435 = vmatprep.subr.bf16.mxu0 0
        %436 = vmatpush1.bf16.xpose.msra.mxu0 0
        %437 = vmatprep.subr.bf16.mxu0 0
        %438 = vmatpush1.bf16.xpose.msra.mxu0 0
        %439 = vmatprep.subr.bf16.mxu0 0
        %440 = vmatpush1.bf16.xpose.msra.mxu0 0
        %441 = vmatprep.subr.bf16.mxu0 0
        %442 = vmatpush1.bf16.xpose.msra.mxu0 0
        %443 = vmatprep.subr.bf16.mxu0 0
        %444 = vmatpush1.bf16.xpose.msra.mxu0 0
        %445 = vmatprep.subr.bf16.mxu0 0
        %446 = vmatpush1.bf16.xpose.msra.mxu0 0
        %447 = vmatprep.subr.bf16.mxu0 0
        %448 = vmatpush1.bf16.xpose.msra.mxu0 0
        %449 = vmatprep.subr.bf16.mxu0 0
        %450 = vmatpush1.bf16.xpose.msra.mxu0 0
        %451 = vmatprep.subr.bf16.mxu0 0
        %452 = vmatpush1.bf16.xpose.msra.mxu0 0
        %453 = vmatprep.subr.bf16.mxu0 0
        %454 = vmatpush1.bf16.xpose.msra.mxu0 0
        %455 = vmatprep.subr.bf16.mxu0 0
        %456 = vmatpush1.bf16.xpose.msra.mxu0 0
        %457 = vmatprep.subr.bf16.mxu0 0
        %458 = vmatpush1.bf16.xpose.msra.mxu0 0
        %459 = vmatprep.mubr.bf16.mxu0 0
        %460 = vmatmul.mubr.bf16.gmra.mrb[0].mxu0 %v422
        %v461 = vpop.f32.mrb[0].mxu0
        %v462 = vadd.f32 0.0, %v461
        %v463 = vpop.f32.mrb[0].mxu0
        %v464 = vpop.f32.mrb[0].mxu0
        %v465 = vpop.f32.mrb[0].mxu0
        %466 = vdwg.mxu0
        %v468 = vsel %vm374, %v356, 0
        %v471 = vsel %vm374, %v360, 0
        %473 = vmatprep.subr.bf16.mxu0 0
        %474 = vmatpush1.bf16.xpose.msra.mxu0 %v471
        %475 = vmatprep.subr.bf16.mxu0 0
        %476 = vmatpush1.bf16.xpose.msra.mxu0 0
        %477 = vmatprep.subr.bf16.mxu0 0
        %478 = vmatpush1.bf16.xpose.msra.mxu0 0
        %479 = vmatprep.subr.bf16.mxu0 0
        %480 = vmatpush1.bf16.xpose.msra.mxu0 0
        %481 = vmatprep.subr.bf16.mxu0 0
        %482 = vmatpush1.bf16.xpose.msra.mxu0 0
        %483 = vmatprep.subr.bf16.mxu0 0
        %484 = vmatpush1.bf16.xpose.msra.mxu0 0
        %485 = vmatprep.subr.bf16.mxu0 0
        %486 = vmatpush1.bf16.xpose.msra.mxu0 0
        %487 = vmatprep.subr.bf16.mxu0 0
        %488 = vmatpush1.bf16.xpose.msra.mxu0 0
        %489 = vmatprep.subr.bf16.mxu0 0
        %490 = vmatpush1.bf16.xpose.msra.mxu0 0
        %491 = vmatprep.subr.bf16.mxu0 0
        %492 = vmatpush1.bf16.xpose.msra.mxu0 0
        %493 = vmatprep.subr.bf16.mxu0 0
        %494 = vmatpush1.bf16.xpose.msra.mxu0 0
        %495 = vmatprep.subr.bf16.mxu0 0
        %496 = vmatpush1.bf16.xpose.msra.mxu0 0
        %497 = vmatprep.subr.bf16.mxu0 0
        %498 = vmatpush1.bf16.xpose.msra.mxu0 0
        %499 = vmatprep.subr.bf16.mxu0 0
        %500 = vmatpush1.bf16.xpose.msra.mxu0 0
        %501 = vmatprep.subr.bf16.mxu0 0
        %502 = vmatpush1.bf16.xpose.msra.mxu0 0
        %503 = vmatprep.subr.bf16.mxu0 0
        %504 = vmatpush1.bf16.xpose.msra.mxu0 0
        %505 = vmatprep.mubr.bf16.mxu0 0
        %506 = vmatmul.mubr.bf16.gmra.mrb[0].mxu0 %v468
        %v507 = vpop.f32.mrb[0].mxu0
        %v508 = vadd.f32 0.0, %v507
        %v509 = vpop.f32.mrb[0].mxu0
        %v510 = vpop.f32.mrb[0].mxu0
        %v511 = vpop.f32.mrb[0].mxu0
        %512 = vdwg.mxu0
        %v514 = vsel %vm374, %v357, 0
        %v517 = vsel %vm374, %v361, 0
        %519 = vmatprep.subr.bf16.mxu0 0
        %520 = vmatpush1.bf16.xpose.msra.mxu0 %v517
        %521 = vmatprep.subr.bf16.mxu0 0
        %522 = vmatpush1.bf16.xpose.msra.mxu0 0
        %523 = vmatprep.subr.bf16.mxu0 0
        %524 = vmatpush1.bf16.xpose.msra.mxu0 0
        %525 = vmatprep.subr.bf16.mxu0 0
        %526 = vmatpush1.bf16.xpose.msra.mxu0 0
        %527 = vmatprep.subr.bf16.mxu0 0
        %528 = vmatpush1.bf16.xpose.msra.mxu0 0
        %529 = vmatprep.subr.bf16.mxu0 0
        %530 = vmatpush1.bf16.xpose.msra.mxu0 0
        %531 = vmatprep.subr.bf16.mxu0 0
        %532 = vmatpush1.bf16.xpose.msra.mxu0 0
        %533 = vmatprep.subr.bf16.mxu0 0
        %534 = vmatpush1.bf16.xpose.msra.mxu0 0
        %535 = vmatprep.subr.bf16.mxu0 0
        %536 = vmatpush1.bf16.xpose.msra.mxu0 0
        %537 = vmatprep.subr.bf16.mxu0 0
        %538 = vmatpush1.bf16.xpose.msra.mxu0 0
        %539 = vmatprep.subr.bf16.mxu0 0
        %540 = vmatpush1.bf16.xpose.msra.mxu0 0
        %541 = vmatprep.subr.bf16.mxu0 0
        %542 = vmatpush1.bf16.xpose.msra.mxu0 0
        %543 = vmatprep.subr.bf16.mxu0 0
        %544 = vmatpush1.bf16.xpose.msra.mxu0 0
        %545 = vmatprep.subr.bf16.mxu0 0
        %546 = vmatpush1.bf16.xpose.msra.mxu0 0
        %547 = vmatprep.subr.bf16.mxu0 0
        %548 = vmatpush1.bf16.xpose.msra.mxu0 0
        %549 = vmatprep.subr.bf16.mxu0 0
        %550 = vmatpush1.bf16.xpose.msra.mxu0 0
        %551 = vmatprep.mubr.bf16.mxu0 0
        %552 = vmatmul.mubr.bf16.gmra.mrb[0].mxu0 %v514
        %v553 = vpop.f32.mrb[0].mxu0
        %v554 = vadd.f32 0.0, %v553
        %v555 = vpop.f32.mrb[0].mxu0
        %v556 = vpop.f32.mrb[0].mxu0
        %v557 = vpop.f32.mrb[0].mxu0
        %558 = vdwg.mxu0
        %v559 = vmul.f32 %v416, 0.17677669
        %v560 = vmul.f32 %v462, 0.17677669
        %v561 = vmul.f32 %v508, 0.17677669
        %v562 = vmul.f32 %v554, 0.17677669
        %v563 = vadd.f32 %v559, %v370
        %v564 = vadd.f32 %v560, %v371
        %v565 = vadd.f32 %v561, %v372
        %v566 = vadd.f32 %v562, %v373
        %vm567 = vcmask 64512
        %v568 = vsel %vm567, %v563, -inf
        %569 = vmax.xlane.f32.xlu0 %v568
        %v570 = vpop.xlane.xlu0 %569
        %v571 = vsel %vm567, %v564, -inf
        %572 = vmax.xlane.f32.xlu0 %v571
        %v573 = vpop.xlane.xlu0 %572
        %v574 = vsel %vm567, %v565, -inf
        %575 = vmax.xlane.f32.xlu0 %v574
        %v576 = vpop.xlane.xlu0 %575
        %v577 = vsel %vm567, %v566, -inf
        %578 = vmax.xlane.f32.xlu0 %v577
        %v579 = vpop.xlane.xlu0 %578
        %v580 = vsub.f32 %v563, %v570
        %v581 = vsub.f32 %v564, %v573
        %v582 = vsub.f32 %v565, %v576
        %v583 = vsub.f32 %v566, %v579
        %v584 = vmul.f32 %v580, 1.442695
        %v585 = vpow.pop %v584
        %v586 = vmul.f32 %v581, 1.442695
        %v587 = vpow.pop %v586
        %v588 = vmul.f32 %v582, 1.442695
        %v589 = vpow.pop %v588
        %v590 = vmul.f32 %v583, 1.442695
        %v591 = vpow.pop %v590
        %v592 = vsel %vm567, %v585, 0.0
        %593 = vadd.xlane.f32.xlu0 %v592
        %v594 = vpop.xlane.xlu0 %593
        %v595 = vsel %vm567, %v587, 0.0
        %596 = vadd.xlane.f32.xlu0 %v595
        %v597 = vpop.xlane.xlu0 %596
        %v598 = vsel %vm567, %v589, 0.0
        %599 = vadd.xlane.f32.xlu0 %v598
        %v600 = vpop.xlane.xlu0 %599
        %v601 = vsel %vm567, %v591, 0.0
        %602 = vadd.xlane.f32.xlu0 %v601
        %v603 = vpop.xlane.xlu0 %602
        %v604 = vpack.c.bf16 %v585, %v585
        %v605 = vpack.c.bf16 %v587, %v587
        %v606 = vpack.c.bf16 %v589, %v589
        %v607 = vpack.c.bf16 %v591, %v591
        %v609 = vsel %vm567, %v604, 0
        %vm611 = vcmask 1043456
        %v613 = vsel %vm611, %v362, 0
        %615 = vmatprep.subr.bf16.mxu0 0
        %616 = vmatpush1.bf16.msra.mxu0 %v613
        %617 = vmatprep.subr.bf16.mxu0 0
        %618 = vmatpush1.bf16.msra.mxu0 0
        %619 = vmatprep.subr.bf16.mxu0 0
        %620 = vmatpush1.bf16.msra.mxu0 0
        %621 = vmatprep.subr.bf16.mxu0 0
        %622 = vmatpush1.bf16.msra.mxu0 0
        %623 = vmatprep.subr.bf16.mxu0 0
        %624 = vmatpush1.bf16.msra.mxu0 0
        %625 = vmatprep.subr.bf16.mxu0 0
        %626 = vmatpush1.bf16.msra.mxu0 0
        %627 = vmatprep.subr.bf16.mxu0 0
        %628 = vmatpush1.bf16.msra.mxu0 0
        %629 = vmatprep.subr.bf16.mxu0 0
        %630 = vmatpush1.bf16.msra.mxu0 0
        %631 = vmatprep.subr.bf16.mxu0 0
        %632 = vmatpush1.bf16.msra.mxu0 0
        %633 = vmatprep.subr.bf16.mxu0 0
        %634 = vmatpush1.bf16.msra.mxu0 0
        %635 = vmatprep.subr.bf16.mxu0 0
        %636 = vmatpush1.bf16.msra.mxu0 0
        %637 = vmatprep.subr.bf16.mxu0 0
        %638 = vmatpush1.bf16.msra.mxu0 0
        %639 = vmatprep.subr.bf16.mxu0 0
        %640 = vmatpush1.bf16.msra.mxu0 0
        %641 = vmatprep.subr.bf16.mxu0 0
        %642 = vmatpush1.bf16.msra.mxu0 0
        %643 = vmatprep.subr.bf16.mxu0 0
        %644 = vmatpush1.bf16.msra.mxu0 0
        %645 = vmatprep.subr.bf16.mxu0 0
        %646 = vmatpush1.bf16.msra.mxu0 0
        %647 = vmatprep.mubr.bf16.mxu0 0
        %648 = vmatmul.mubr.bf16.gmra.mrb[0].mxu0 %v609
        %v649 = vpop.f32.mrb[0].mxu0
        %v650 = vadd.f32 0.0, %v649
        %v651 = vpop.f32.mrb[0].mxu0
        %v652 = vpop.f32.mrb[0].mxu0
        %v653 = vpop.f32.mrb[0].mxu0
        %654 = vdwg.mxu0
        %v656 = vsel %vm567, %v605, 0
        %v659 = vsel %vm611, %v363, 0
        %661 = vmatprep.subr.bf16.mxu0 0
        %662 = vmatpush1.bf16.msra.mxu0 %v659
        %663 = vmatprep.subr.bf16.mxu0 0
        %664 = vmatpush1.bf16.msra.mxu0 0
        %665 = vmatprep.subr.bf16.mxu0 0
        %666 = vmatpush1.bf16.msra.mxu0 0
        %667 = vmatprep.subr.bf16.mxu0 0
        %668 = vmatpush1.bf16.msra.mxu0 0
        %669 = vmatprep.subr.bf16.mxu0 0
        %670 = vmatpush1.bf16.msra.mxu0 0
        %671 = vmatprep.subr.bf16.mxu0 0
        %672 = vmatpush1.bf16.msra.mxu0 0
        %673 = vmatprep.subr.bf16.mxu0 0
        %674 = vmatpush1.bf16.msra.mxu0 0
        %675 = vmatprep.subr.bf16.mxu0 0
        %676 = vmatpush1.bf16.msra.mxu0 0
        %677 = vmatprep.subr.bf16.mxu0 0
        %678 = vmatpush1.bf16.msra.mxu0 0
        %679 = vmatprep.subr.bf16.mxu0 0
        %680 = vmatpush1.bf16.msra.mxu0 0
        %681 = vmatprep.subr.bf16.mxu0 0
        %682 = vmatpush1.bf16.msra.mxu0 0
        %683 = vmatprep.subr.bf16.mxu0 0
        %684 = vmatpush1.bf16.msra.mxu0 0
        %685 = vmatprep.subr.bf16.mxu0 0
        %686 = vmatpush1.bf16.msra.mxu0 0
        %687 = vmatprep.subr.bf16.mxu0 0
        %688 = vmatpush1.bf16.msra.mxu0 0
        %689 = vmatprep.subr.bf16.mxu0 0
        %690 = vmatpush1.bf16.msra.mxu0 0
        %691 = vmatprep.subr.bf16.mxu0 0
        %692 = vmatpush1.bf16.msra.mxu0 0
        %693 = vmatprep.mubr.bf16.mxu0 0
        %694 = vmatmul.mubr.bf16.gmra.mrb[0].mxu0 %v656
        %v695 = vpop.f32.mrb[0].mxu0
        %v696 = vadd.f32 0.0, %v695
        %v697 = vpop.f32.mrb[0].mxu0
        %v698 = vpop.f32.mrb[0].mxu0
        %v699 = vpop.f32.mrb[0].mxu0
        %700 = vdwg.mxu0
        %v702 = vsel %vm567, %v606, 0
        %v705 = vsel %vm611, %v364, 0
        %707 = vmatprep.subr.bf16.mxu0 0
        %708 = vmatpush1.bf16.msra.mxu0 %v705
        %709 = vmatprep.subr.bf16.mxu0 0
        %710 = vmatpush1.bf16.msra.mxu0 0
        %711 = vmatprep.subr.bf16.mxu0 0
        %712 = vmatpush1.bf16.msra.mxu0 0
        %713 = vmatprep.subr.bf16.mxu0 0
        %714 = vmatpush1.bf16.msra.mxu0 0
        %715 = vmatprep.subr.bf16.mxu0 0
        %716 = vmatpush1.bf16.msra.mxu0 0
        %717 = vmatprep.subr.bf16.mxu0 0
        %718 = vmatpush1.bf16.msra.mxu0 0
        %719 = vmatprep.subr.bf16.mxu0 0
        %720 = vmatpush1.bf16.msra.mxu0 0
        %721 = vmatprep.subr.bf16.mxu0 0
        %722 = vmatpush1.bf16.msra.mxu0 0
        %723 = vmatprep.subr.bf16.mxu0 0
        %724 = vmatpush1.bf16.msra.mxu0 0
        %725 = vmatprep.subr.bf16.mxu0 0
        %726 = vmatpush1.bf16.msra.mxu0 0
        %727 = vmatprep.subr.bf16.mxu0 0
        %728 = vmatpush1.bf16.msra.mxu0 0
        %729 = vmatprep.subr.bf16.mxu0 0
        %730 = vmatpush1.bf16.msra.mxu0 0
        %731 = vmatprep.subr.bf16.mxu0 0
        %732 = vmatpush1.bf16.msra.mxu0 0
        %733 = vmatprep.subr.bf16.mxu0 0
        %734 = vmatpush1.bf16.msra.mxu0 0
        %735 = vmatprep.subr.bf16.mxu0 0
        %736 = vmatpush1.bf16.msra.mxu0 0
        %737 = vmatprep.subr.bf16.mxu0 0
        %738 = vmatpush1.bf16.msra.mxu0 0
        %739 = vmatprep.mubr.bf16.mxu0 0
        %740 = vmatmul.mubr.bf16.gmra.mrb[0].mxu0 %v702
        %v741 = vpop.f32.mrb[0].mxu0
        %v742 = vadd.f32 0.0, %v741
        %v743 = vpop.f32.mrb[0].mxu0
        %v744 = vpop.f32.mrb[0].mxu0
        %v745 = vpop.f32.mrb[0].mxu0
        %746 = vdwg.mxu0
        %v748 = vsel %vm567, %v607, 0
        %v751 = vsel %vm611, %v365, 0
        %753 = vmatprep.subr.bf16.mxu0 0
        %754 = vmatpush1.bf16.msra.mxu0 %v751
        %755 = vmatprep.subr.bf16.mxu0 0
        %756 = vmatpush1.bf16.msra.mxu0 0
        %757 = vmatprep.subr.bf16.mxu0 0
        %758 = vmatpush1.bf16.msra.mxu0 0
        %759 = vmatprep.subr.bf16.mxu0 0
        %760 = vmatpush1.bf16.msra.mxu0 0
        %761 = vmatprep.subr.bf16.mxu0 0
        %762 = vmatpush1.bf16.msra.mxu0 0
        %763 = vmatprep.subr.bf16.mxu0 0
        %764 = vmatpush1.bf16.msra.mxu0 0
        %765 = vmatprep.subr.bf16.mxu0 0
        %766 = vmatpush1.bf16.msra.mxu0 0
        %767 = vmatprep.subr.bf16.mxu0 0
        %768 = vmatpush1.bf16.msra.mxu0 0
        %769 = vmatprep.subr.bf16.mxu0 0
        %770 = vmatpush1.bf16.msra.mxu0 0
        %771 = vmatprep.subr.bf16.mxu0 0
        %772 = vmatpush1.bf16.msra.mxu0 0
        %773 = vmatprep.subr.bf16.mxu0 0
        %774 = vmatpush1.bf16.msra.mxu0 0
        %775 = vmatprep.subr.bf16.mxu0 0
        %776 = vmatpush1.bf16.msra.mxu0 0
        %777 = vmatprep.subr.bf16.mxu0 0
        %778 = vmatpush1.bf16.msra.mxu0 0
        %779 = vmatprep.subr.bf16.mxu0 0
        %780 = vmatpush1.bf16.msra.mxu0 0
        %781 = vmatprep.subr.bf16.mxu0 0
        %782 = vmatpush1.bf16.msra.mxu0 0
        %783 = vmatprep.subr.bf16.mxu0 0
        %784 = vmatpush1.bf16.msra.mxu0 0
        %785 = vmatprep.mubr.bf16.mxu0 0
        %786 = vmatmul.mubr.bf16.gmra.mrb[0].mxu0 %v748
        %v787 = vpop.f32.mrb[0].mxu0
        %v788 = vadd.f32 0.0, %v787
        %v789 = vpop.f32.mrb[0].mxu0
        %v790 = vpop.f32.mrb[0].mxu0
        %v791 = vpop.f32.mrb[0].mxu0
        %792 = vdwg.mxu0
        %v793 = vrcp.pop %v594
        %v794 = vrcp.pop %v597
        %v795 = vrcp.pop %v600
        %v796 = vrcp.pop %v603
        %v797 = vmul.f32 %v650, %v793
        %v798 = vmul.f32 %v696, %v794
        %v799 = vmul.f32 %v742, %v795
        %v800 = vmul.f32 %v788, %v796
        %v801 = vpack.c.bf16 %v797, %v797
        %v802 = vpack.c.bf16 %v798, %v798
        %v803 = vpack.c.bf16 %v799, %v799
        %v804 = vpack.c.bf16 %v800, %v800
        %vm805 = vcmask 257024
        %806 = vst.msk [vmem:[%s352] sm:$0xf] %vm805, %v801
        %807 = vst.msk [vmem:[%s352 + $0x4] sm:$0xf] %vm805, %v802
        %808 = vst.msk [vmem:[%s352 + $0x8] sm:$0xf] %vm805, %v803
        %809 = vst.msk [vmem:[%s352 + $0xc] sm:$0xf] %vm805, %v804
        %s810 = sand.u32 %s157, 1
        %s811 = scalar_lea.sflag [#allocation4], %s810
        %s812 = sand.u32 %s157, 1
        %s813 = smul.addr %s812, 16
        %s814 = scalar_lea.vmem [#allocation10], %s813
        // Predicated region
        $region53: #{tpu_custom_call.1} parent=35 // pred_check
          %p815 = pneg %p167
        $region54: #{tpu_custom_call.1} parent=35 // pred_check_branch
          %817 = sbr.rel (%p815) target = $region56
        $region55: #{tpu_custom_call.1} parent=35 // pred_region
          %s819 = ssub.s32 256, 256
          %820 = vsyncadd %s811, %s819
          %s821 = smul.addr %s31, 4
          %s822 = sadd.s32 %s32, %s821
          %s823 = smul.addr %s822, 64
          %s824 = scalar_lea.hbm %s4, %s823
          %s825 = sshll.u32 %s814, 4
          %s826 = int_to_ptr.vmem [resolvable:$true] %s825
          %831 = dma.vmem_to_hbm [thread:$0]  %s826, 256, %s824, %s811, 64, 64, 4
        $region56: #{tpu_custom_call.1} parent=35 // pred_fallthru
          _
      $region36: #{tpu_custom_call.1} parent=5 // pred_fallthru
        _
      %p832 = scmp.le.s32.totalorder 2, %s22
      // Predicated region
      $region57: #{tpu_custom_call.1} parent=5 // pred_check
        %p833 = pneg %p832
      $region58: #{tpu_custom_call.1} parent=5 // pred_check_branch
        %835 = sbr.rel (%p833) target = $region60
      $region59: #{tpu_custom_call.1} parent=5 // pred_region
        %s836 = ssub.s32 %s22, 2
        // Predicated region
        $region61: #{tpu_custom_call.1} parent=59 // pred_check
          %p837 = pneg %p173
        $region62: #{tpu_custom_call.1} parent=59 // pred_check_branch
          %839 = sbr.rel (%p837) target = $region64
        $region63: #{tpu_custom_call.1} parent=59 // pred_region
          %s840 = sand.u32 %s158, 1
          %s841 = scalar_lea.sflag [#allocation4], %s840
          %s842 = sand.u32 %s158, 1
          %s843 = smul.addr %s842, 16
          %s844 = scalar_lea.vmem [#allocation10], %s843
          %845 = dma.done %s841, 256
        $region64: #{tpu_custom_call.1} parent=59 // pred_fallthru
          _
      $region60: #{tpu_custom_call.1} parent=5 // pred_fallthru
        _
    $region6: #{tpu_custom_call.1} parent=1 // loop_footer
      %s26 = sadd.s32 1, %s22
    $region7: #{tpu_custom_call.1} parent=1 // loop_footer_branch
      %21 = sbr.rel target = $region3
    $region8: #{tpu_custom_call.1} parent=1 // loop_exit
      _
    %846 = vsyncpa [#allocation3], 1
    %s847 = scalar_lea.sflag [#allocation3], 1
    %848 = vsyncpa %s847, 1
    %849 = vsyncpa [#allocation6], 1
    %s850 = scalar_lea.sflag [#allocation6], 1
    %851 = vsyncpa %s850, 1
    %852 = vsyncpa [#allocation9], 1
    %s853 = scalar_lea.sflag [#allocation9], 1
    %854 = vsyncpa %s853, 1
    %855 = vsyncpa [#allocation4], 1
    %s856 = scalar_lea.sflag [#allocation4], 1
    %857 = vsyncpa %s856, 1

</llo_original>
